<compile_context>
chip_gen: v5e
topology: v5e:2x2
jax: 0.10.0
libtpu: 0.0.40
codegen_flags: <defaults>
</compile_context>

<pallas_src>
import functools

import jax
import jax.numpy as jnp
import numpy as np
from jax import lax
from jax.experimental import pallas as pl
from jax.experimental.pallas import tpu as pltpu


def _toeplitz_w(w_dhwio, W):
    """Fold the kw taps and the output-w axis of a 3x3x3 conv weight into a
    banded (block-Toeplitz) matrix, one per (kd, kh) pair.

      w_dhwio: (3, 3, 3, Ci, Co)
      returns: (9, W, Ci, W, Co) with
        out[t, w_in, ci, w_out, co] = w_dhwio[kd, kh, w_in - w_out + 1, ci, co]
        (zero outside the +-1 band), t = kd*3 + kh.  The dropped out-of-range
        taps are exactly the ones that hit the zero w-padding.
    """
    kD, kH, kW, Ci, Co = w_dhwio.shape
    assert (kD, kH, kW) == (3, 3, 3), "NoduleBlock uses 3x3x3 convolutions"
    mats = []
    for kd in range(kD):
        for kh in range(kH):
            B = jnp.zeros((W, Ci, W, Co), w_dhwio.dtype)
            for kw in range(kW):
                t = np.zeros((W, W), np.float32)
                src = np.arange(W) + kw - 1        # input col feeding output col w
                ok = (src >= 0) & (src < W)
                t[src[ok], np.arange(W)[ok]] = 1.0
                B = B + jnp.einsum('pw,ic->piwc', jnp.asarray(t),
                                   w_dhwio[kd, kh, kw])
            mats.append(B)
    return jnp.stack(mats)                          # (9, W, Ci, W, Co)


def _nodule_kernel(x_ref, w1_ref, b1_ref, w2_ref, b2_ref, o_ref,
                   pad2_ref, tmp_ref, *, N, D, H, W, Cin, Cc):
    """Fused Conv3d+ReLU -> Conv3d+ReLU -> MaxPool3d(2,2), one grid step.

      x_ref   : (N, D+2, H+2, W*Cin)   d/h-padded input, lanes = (w, ci)
      w1_ref  : (9, W*Cin, W*Cc)       block-Toeplitz conv1 weights, cols (w, co)
      b1_ref  : (1, W*Cc)
      w2_ref  : (9, W*Cc,  W*Cc)       conv2 weights, cols (w-parity, w//2, co)
      b2_ref  : (1, W*Cc)
      o_ref   : (N*Do*Ho, Wo*Cc)       pooled output, rows (n,do,ho), lanes (wo,co)
      pad2_ref: (N, D+2, H+2, W*Cc)    VMEM halo buffer for conv2's input
      tmp_ref : (N*Do*H, Wo*Cc)        VMEM staging for the stride-2 h-pool read
    """
    R = N * D * H
    Do, Ho, Wo = D // 2, H // 2, W // 2

    def conv3x3x3_relu(pad_ref, w_ref, b_ref, cin):
        # 9 (kd, kh) matmuls; kw and the output-w axis live inside the
        # Toeplitz weight, so every LHS is a plain leading/sublane slice of
        # the padded buffer (no im2col scatter), K = W*cin, Nout = W*Cc.
        acc = jnp.zeros((R, W * Cc), jnp.float32)
        for kd in range(3):
            for kh in range(3):
                lhs = pad_ref[:, kd:kd + D, kh:kh + H, :].reshape(R, W * cin)
                acc = acc + jnp.dot(lhs, w_ref[kd * 3 + kh],
                                    preferred_element_type=jnp.float32)
        return jnp.maximum(acc + b_ref[...], 0.0)    # (R, W*Cc)

    # ---- conv1 + ReLU: reads straight from the (already d/h-padded) input --
    a1 = conv3x3x3_relu(x_ref, w1_ref, b1_ref, Cin)          # lanes (w, c)

    # ---- conv2 + ReLU: build the d/h halo in VMEM; the zero fill runs once
    #      (single grid step) and only the halo faces actually need it. -------
    pad2_ref[...] = jnp.zeros(pad2_ref.shape, jnp.float32)
    pad2_ref[:, 1:1 + D, 1:1 + H, :] = a1.reshape(N, D, H, W * Cc)
    a2 = conv3x3x3_relu(pad2_ref, w2_ref, b2_ref, Cc)        # lanes (wpar, wo, c)

    # ---- MaxPool3d(2,2): no selection matmuls ------------------------------
    # d-pairs: reshape rows (n,d,h) -> (n*Do, 2*H, .) and max the two halves.
    a2r = a2.reshape(N * Do, 2 * H, W * Cc)
    pd = jnp.maximum(a2r[:, :H, :], a2r[:, H:, :])           # (N*Do, H, W*Cc)
    # w-pairs: conv2 lanes are (w-parity, wo, c) -> max of the two lane halves.
    pw = jnp.maximum(pd[..., :Wo * Cc], pd[..., Wo * Cc:])   # (N*Do, H, Wo*Cc)
    # h-pairs: stride-2 sublane reads of a small VMEM staging buffer.
    tmp_ref[...] = pw.reshape(N * Do * H, Wo * Cc)
    ev = tmp_ref[pl.ds(0, N * Do * Ho, 2), :]
    od = tmp_ref[pl.ds(1, N * Do * Ho, 2), :]
    o_ref[...] = jnp.maximum(ev, od)                         # (N*Do*Ho, Wo*Cc)


def nodule_block_forward(x_ncdhw, params):
    """NoduleBlock forward.  x: (N, Cin, D, H, W) f32 -> (N, Cc, D/2, H/2, W/2)."""
    w1, b1, w2, b2 = params
    N, Cin, D, H, W = x_ncdhw.shape
    Cc = w1.shape[-1]
    assert D % 2 == 0 and H % 2 == 0 and W % 2 == 0, "MaxPool3d(2,2) needs even dims"
    Do, Ho, Wo = D // 2, H // 2, W // 2

    # NCDHW -> NDHWC, pad only d/h (the w halo is folded into the Toeplitz
    # band), merge (w, c) into a lane-dense last dim.  32 KiB of host-side pad.
    x = jnp.transpose(x_ncdhw, (0, 2, 3, 4, 1))
    xp = jnp.pad(x, ((0, 0), (1, 1), (1, 1), (0, 0), (0, 0)))
    xp = xp.reshape(N, D + 2, H + 2, W * Cin)

    # Block-Toeplitz weights (tiny, built once on the XLA side).
    w1t = _toeplitz_w(w1, W).reshape(9, W * Cin, W * Cc)     # cols (w, co)
    w2t = _toeplitz_w(w2, W)                                 # (9, W, Cc, W, Cc)
    # Permute conv2's output columns to (w-parity, w//2, co) so the in-kernel
    # w-pooling is a static lane-half max.
    col_order = np.concatenate([np.arange(0, W, 2), np.arange(1, W, 2)])
    w2t = jnp.take(w2t, col_order, axis=3).reshape(9, W * Cc, W * Cc)
    b1t = jnp.tile(b1, W).reshape(1, W * Cc)
    b2t = jnp.tile(b2, W).reshape(1, W * Cc)

    kernel = functools.partial(_nodule_kernel, N=N, D=D, H=H, W=W,
                               Cin=Cin, Cc=Cc)

    # Single grid step: batch is folded into the matmul M dimension (M = N*D*H)
    # -- on single-TC v5e/v6e a per-batch grid only adds pipeline overhead.
    out = pl.pallas_call(
        kernel,
        out_shape=jax.ShapeDtypeStruct((N * Do * Ho, Wo * Cc), jnp.float32),
        grid_spec=pltpu.PrefetchScalarGridSpec(
            num_scalar_prefetch=0,
            grid=(1,),
            in_specs=[
                pl.BlockSpec((N, D + 2, H + 2, W * Cin), lambda i: (0, 0, 0, 0)),
                pl.BlockSpec((9, W * Cin, W * Cc), lambda i: (0, 0, 0)),
                pl.BlockSpec((1, W * Cc), lambda i: (0, 0)),
                pl.BlockSpec((9, W * Cc, W * Cc), lambda i: (0, 0, 0)),
                pl.BlockSpec((1, W * Cc), lambda i: (0, 0)),
            ],
            out_specs=pl.BlockSpec((N * Do * Ho, Wo * Cc), lambda i: (0, 0)),
            scratch_shapes=[
                pltpu.VMEM((N, D + 2, H + 2, W * Cc), jnp.float32),
                pltpu.VMEM((N * Do * H, Wo * Cc), jnp.float32),
            ],
        ),
        compiler_params=pltpu.CompilerParams(
            dimension_semantics=("arbitrary",)),
    )(xp, w1t, b1t, w2t, b2t)

    out = out.reshape(N, Do, Ho, Wo, Cc)
    return jnp.transpose(out, (0, 4, 1, 2, 3))               # -> NCDHW


# Pure-JAX reference for validation.
def _reference_forward(x_ncdhw, params):
    w1, b1, w2, b2 = params
    x = jnp.transpose(x_ncdhw, (0, 2, 3, 4, 1))
    dn = ('NDHWC', 'DHWIO', 'NDHWC')
    x = lax.conv_general_dilated(x, w1, (1, 1, 1), 'SAME', dimension_numbers=dn,
                                 precision=lax.Precision.HIGHEST) + b1
    x = jnp.maximum(x, 0.0)
    x = lax.conv_general_dilated(x, w2, (1, 1, 1), 'SAME', dimension_numbers=dn,
                                 precision=lax.Precision.HIGHEST) + b2
    x = jnp.maximum(x, 0.0)
    x = lax.reduce_window(x, -jnp.inf, lax.max,
                          (1, 2, 2, 2, 1), (1, 2, 2, 2, 1), 'VALID')
    return jnp.transpose(x, (0, 4, 1, 2, 3))


if __name__ == "__main__":
    # NoduleBlock(in_channels=4, conv_channels=8); input NCDHW = (2, 4, 8, 8, 8)
    N, Cin, Cconv = 2, 4, 8
    D = H = W = 8

    key = jax.random.PRNGKey(0)
    kx, kw1, kb1, kw2, kb2 = jax.random.split(key, 5)
    x = jax.random.normal(kx, (N, Cin, D, H, W), dtype=jnp.float32)

    # Deterministic synthetic parameters (DHWIO weight layout).
    w1 = 0.1 * jax.random.normal(kw1, (3, 3, 3, Cin, Cconv), dtype=jnp.float32)
    b1 = 0.1 * jax.random.normal(kb1, (Cconv,), dtype=jnp.float32)
    w2 = 0.1 * jax.random.normal(kw2, (3, 3, 3, Cconv, Cconv), dtype=jnp.float32)
    b2 = 0.1 * jax.random.normal(kb2, (Cconv,), dtype=jnp.float32)
    params = (w1, b1, w2, b2)

    out = jax.block_until_ready(nodule_block_forward(x, params))
    ref = jax.block_until_ready(_reference_forward(x, params))

    assert out.shape == (N, Cconv, D // 2, H // 2, W // 2), out.shape
    np.testing.assert_allclose(np.asarray(out), np.asarray(ref),
                               rtol=1e-4, atol=1e-4)
    print("KERNEL_OK")
</pallas_src>

<mosaic_0001>
module attributes {stable_mosaic.version = 11 : i64} {
  func.func @_nodule_kernel(%arg0: i32, %arg1: memref<2x10x10x32xf32, #tpu.memory_space<vmem>>, %arg2: memref<9x32x64xf32, #tpu.memory_space<vmem>>, %arg3: memref<1x64xf32, #tpu.memory_space<vmem>>, %arg4: memref<9x64x64xf32, #tpu.memory_space<vmem>>, %arg5: memref<1x64xf32, #tpu.memory_space<vmem>>, %arg6: memref<32x32xf32, #tpu.memory_space<vmem>>, %arg7: memref<2x10x10x64xf32, #tpu.memory_space<vmem>>, %arg8: memref<64x32xf32, #tpu.memory_space<vmem>>) attributes {dimension_semantics = [#tpu.dimension_semantics<arbitrary>], iteration_bounds = array<i64: 1>, scalar_prefetch = 0 : i64, scratch_operands = 2 : i64, tpu.core_type = #tpu.core_type<tc>, window_params = [{pipeline_mode = #tpu.pipeline_mode<synchronous>, transform_indices = @transform_0, window_bounds = array<i64: 2, 10, 10, 32>}, {pipeline_mode = #tpu.pipeline_mode<synchronous>, transform_indices = @transform_1, window_bounds = array<i64: 9, 32, 64>}, {pipeline_mode = #tpu.pipeline_mode<synchronous>, transform_indices = @transform_2, window_bounds = array<i64: 1, 64>}, {pipeline_mode = #tpu.pipeline_mode<synchronous>, transform_indices = @transform_3, window_bounds = array<i64: 9, 64, 64>}, {pipeline_mode = #tpu.pipeline_mode<synchronous>, transform_indices = @transform_4, window_bounds = array<i64: 1, 64>}, {pipeline_mode = #tpu.pipeline_mode<synchronous>, transform_indices = @transform_5, window_bounds = array<i64: 32, 32>}]} {
    %cst = arith.constant 0.000000e+00 : f32
    %0 = vector.broadcast %cst : f32 to vector<128x64xf32>
    %c0 = arith.constant 0 : index
    %c0_0 = arith.constant 0 : index
    %c0_1 = arith.constant 0 : index
    %c0_2 = arith.constant 0 : index
    %1 = vector.load %arg1[%c0, %c0_0, %c0_1, %c0_2] : memref<2x10x10x32xf32, #tpu.memory_space<vmem>>, vector<2x8x8x32xf32>
    %2 = vector.shape_cast %1 : vector<2x8x8x32xf32> to vector<128x32xf32>
    %c0_3 = arith.constant 0 : index
    %c0_4 = arith.constant 0 : index
    %c0_5 = arith.constant 0 : index
    %3 = vector.load %arg2[%c0_3, %c0_4, %c0_5] : memref<9x32x64xf32, #tpu.memory_space<vmem>>, vector<1x32x64xf32>
    %4 = vector.shape_cast %3 : vector<1x32x64xf32> to vector<32x64xf32>
    %cst_6 = arith.constant dense<0.000000e+00> : vector<128x64xf32>
    %5 = tpu.matmul %2, %4, %cst_6 {dimension_numbers = #tpu.dot_dimension_numbers<[1], [0], [0], [1], [0, 0, 1, 1], [], []>} : vector<128x32xf32>, vector<32x64xf32>, vector<128x64xf32> -> vector<128x64xf32>
    %6 = arith.addf %0, %5 : vector<128x64xf32>
    %c0_7 = arith.constant 0 : index
    %c0_8 = arith.constant 0 : index
    %c1 = arith.constant 1 : index
    %c0_9 = arith.constant 0 : index
    %7 = vector.load %arg1[%c0_7, %c0_8, %c1, %c0_9] : memref<2x10x10x32xf32, #tpu.memory_space<vmem>>, vector<2x8x8x32xf32>
    %8 = vector.shape_cast %7 : vector<2x8x8x32xf32> to vector<128x32xf32>
    %c1_10 = arith.constant 1 : index
    %c0_11 = arith.constant 0 : index
    %c0_12 = arith.constant 0 : index
    %9 = vector.load %arg2[%c1_10, %c0_11, %c0_12] : memref<9x32x64xf32, #tpu.memory_space<vmem>>, vector<1x32x64xf32>
    %10 = vector.shape_cast %9 : vector<1x32x64xf32> to vector<32x64xf32>
    %cst_13 = arith.constant dense<0.000000e+00> : vector<128x64xf32>
    %11 = tpu.matmul %8, %10, %cst_13 {dimension_numbers = #tpu.dot_dimension_numbers<[1], [0], [0], [1], [0, 0, 1, 1], [], []>} : vector<128x32xf32>, vector<32x64xf32>, vector<128x64xf32> -> vector<128x64xf32>
    %12 = arith.addf %6, %11 : vector<128x64xf32>
    %c0_14 = arith.constant 0 : index
    %c0_15 = arith.constant 0 : index
    %c2 = arith.constant 2 : index
    %c0_16 = arith.constant 0 : index
    %13 = vector.load %arg1[%c0_14, %c0_15, %c2, %c0_16] : memref<2x10x10x32xf32, #tpu.memory_space<vmem>>, vector<2x8x8x32xf32>
    %14 = vector.shape_cast %13 : vector<2x8x8x32xf32> to vector<128x32xf32>
    %c2_17 = arith.constant 2 : index
    %c0_18 = arith.constant 0 : index
    %c0_19 = arith.constant 0 : index
    %15 = vector.load %arg2[%c2_17, %c0_18, %c0_19] : memref<9x32x64xf32, #tpu.memory_space<vmem>>, vector<1x32x64xf32>
    %16 = vector.shape_cast %15 : vector<1x32x64xf32> to vector<32x64xf32>
    %cst_20 = arith.constant dense<0.000000e+00> : vector<128x64xf32>
    %17 = tpu.matmul %14, %16, %cst_20 {dimension_numbers = #tpu.dot_dimension_numbers<[1], [0], [0], [1], [0, 0, 1, 1], [], []>} : vector<128x32xf32>, vector<32x64xf32>, vector<128x64xf32> -> vector<128x64xf32>
    %18 = arith.addf %12, %17 : vector<128x64xf32>
    %c0_21 = arith.constant 0 : index
    %c1_22 = arith.constant 1 : index
    %c0_23 = arith.constant 0 : index
    %c0_24 = arith.constant 0 : index
    %19 = vector.load %arg1[%c0_21, %c1_22, %c0_23, %c0_24] : memref<2x10x10x32xf32, #tpu.memory_space<vmem>>, vector<2x8x8x32xf32>
    %20 = vector.shape_cast %19 : vector<2x8x8x32xf32> to vector<128x32xf32>
    %c3 = arith.constant 3 : index
    %c0_25 = arith.constant 0 : index
    %c0_26 = arith.constant 0 : index
    %21 = vector.load %arg2[%c3, %c0_25, %c0_26] : memref<9x32x64xf32, #tpu.memory_space<vmem>>, vector<1x32x64xf32>
    %22 = vector.shape_cast %21 : vector<1x32x64xf32> to vector<32x64xf32>
    %cst_27 = arith.constant dense<0.000000e+00> : vector<128x64xf32>
    %23 = tpu.matmul %20, %22, %cst_27 {dimension_numbers = #tpu.dot_dimension_numbers<[1], [0], [0], [1], [0, 0, 1, 1], [], []>} : vector<128x32xf32>, vector<32x64xf32>, vector<128x64xf32> -> vector<128x64xf32>
    %24 = arith.addf %18, %23 : vector<128x64xf32>
    %c0_28 = arith.constant 0 : index
    %c1_29 = arith.constant 1 : index
    %c1_30 = arith.constant 1 : index
    %c0_31 = arith.constant 0 : index
    %25 = vector.load %arg1[%c0_28, %c1_29, %c1_30, %c0_31] : memref<2x10x10x32xf32, #tpu.memory_space<vmem>>, vector<2x8x8x32xf32>
    %26 = vector.shape_cast %25 : vector<2x8x8x32xf32> to vector<128x32xf32>
    %c4 = arith.constant 4 : index
    %c0_32 = arith.constant 0 : index
    %c0_33 = arith.constant 0 : index
    %27 = vector.load %arg2[%c4, %c0_32, %c0_33] : memref<9x32x64xf32, #tpu.memory_space<vmem>>, vector<1x32x64xf32>
    %28 = vector.shape_cast %27 : vector<1x32x64xf32> to vector<32x64xf32>
    %cst_34 = arith.constant dense<0.000000e+00> : vector<128x64xf32>
    %29 = tpu.matmul %26, %28, %cst_34 {dimension_numbers = #tpu.dot_dimension_numbers<[1], [0], [0], [1], [0, 0, 1, 1], [], []>} : vector<128x32xf32>, vector<32x64xf32>, vector<128x64xf32> -> vector<128x64xf32>
    %30 = arith.addf %24, %29 : vector<128x64xf32>
    %c0_35 = arith.constant 0 : index
    %c1_36 = arith.constant 1 : index
    %c2_37 = arith.constant 2 : index
    %c0_38 = arith.constant 0 : index
    %31 = vector.load %arg1[%c0_35, %c1_36, %c2_37, %c0_38] : memref<2x10x10x32xf32, #tpu.memory_space<vmem>>, vector<2x8x8x32xf32>
    %32 = vector.shape_cast %31 : vector<2x8x8x32xf32> to vector<128x32xf32>
    %c5 = arith.constant 5 : index
    %c0_39 = arith.constant 0 : index
    %c0_40 = arith.constant 0 : index
    %33 = vector.load %arg2[%c5, %c0_39, %c0_40] : memref<9x32x64xf32, #tpu.memory_space<vmem>>, vector<1x32x64xf32>
    %34 = vector.shape_cast %33 : vector<1x32x64xf32> to vector<32x64xf32>
    %cst_41 = arith.constant dense<0.000000e+00> : vector<128x64xf32>
    %35 = tpu.matmul %32, %34, %cst_41 {dimension_numbers = #tpu.dot_dimension_numbers<[1], [0], [0], [1], [0, 0, 1, 1], [], []>} : vector<128x32xf32>, vector<32x64xf32>, vector<128x64xf32> -> vector<128x64xf32>
    %36 = arith.addf %30, %35 : vector<128x64xf32>
    %c0_42 = arith.constant 0 : index
    %c2_43 = arith.constant 2 : index
    %c0_44 = arith.constant 0 : index
    %c0_45 = arith.constant 0 : index
    %37 = vector.load %arg1[%c0_42, %c2_43, %c0_44, %c0_45] : memref<2x10x10x32xf32, #tpu.memory_space<vmem>>, vector<2x8x8x32xf32>
    %38 = vector.shape_cast %37 : vector<2x8x8x32xf32> to vector<128x32xf32>
    %c6 = arith.constant 6 : index
    %c0_46 = arith.constant 0 : index
    %c0_47 = arith.constant 0 : index
    %39 = vector.load %arg2[%c6, %c0_46, %c0_47] : memref<9x32x64xf32, #tpu.memory_space<vmem>>, vector<1x32x64xf32>
    %40 = vector.shape_cast %39 : vector<1x32x64xf32> to vector<32x64xf32>
    %cst_48 = arith.constant dense<0.000000e+00> : vector<128x64xf32>
    %41 = tpu.matmul %38, %40, %cst_48 {dimension_numbers = #tpu.dot_dimension_numbers<[1], [0], [0], [1], [0, 0, 1, 1], [], []>} : vector<128x32xf32>, vector<32x64xf32>, vector<128x64xf32> -> vector<128x64xf32>
    %42 = arith.addf %36, %41 : vector<128x64xf32>
    %c0_49 = arith.constant 0 : index
    %c2_50 = arith.constant 2 : index
    %c1_51 = arith.constant 1 : index
    %c0_52 = arith.constant 0 : index
    %43 = vector.load %arg1[%c0_49, %c2_50, %c1_51, %c0_52] : memref<2x10x10x32xf32, #tpu.memory_space<vmem>>, vector<2x8x8x32xf32>
    %44 = vector.shape_cast %43 : vector<2x8x8x32xf32> to vector<128x32xf32>
    %c7 = arith.constant 7 : index
    %c0_53 = arith.constant 0 : index
    %c0_54 = arith.constant 0 : index
    %45 = vector.load %arg2[%c7, %c0_53, %c0_54] : memref<9x32x64xf32, #tpu.memory_space<vmem>>, vector<1x32x64xf32>
    %46 = vector.shape_cast %45 : vector<1x32x64xf32> to vector<32x64xf32>
    %cst_55 = arith.constant dense<0.000000e+00> : vector<128x64xf32>
    %47 = tpu.matmul %44, %46, %cst_55 {dimension_numbers = #tpu.dot_dimension_numbers<[1], [0], [0], [1], [0, 0, 1, 1], [], []>} : vector<128x32xf32>, vector<32x64xf32>, vector<128x64xf32> -> vector<128x64xf32>
    %48 = arith.addf %42, %47 : vector<128x64xf32>
    %c0_56 = arith.constant 0 : index
    %c2_57 = arith.constant 2 : index
    %c2_58 = arith.constant 2 : index
    %c0_59 = arith.constant 0 : index
    %49 = vector.load %arg1[%c0_56, %c2_57, %c2_58, %c0_59] : memref<2x10x10x32xf32, #tpu.memory_space<vmem>>, vector<2x8x8x32xf32>
    %50 = vector.shape_cast %49 : vector<2x8x8x32xf32> to vector<128x32xf32>
    %c8 = arith.constant 8 : index
    %c0_60 = arith.constant 0 : index
    %c0_61 = arith.constant 0 : index
    %51 = vector.load %arg2[%c8, %c0_60, %c0_61] : memref<9x32x64xf32, #tpu.memory_space<vmem>>, vector<1x32x64xf32>
    %52 = vector.shape_cast %51 : vector<1x32x64xf32> to vector<32x64xf32>
    %cst_62 = arith.constant dense<0.000000e+00> : vector<128x64xf32>
    %53 = tpu.matmul %50, %52, %cst_62 {dimension_numbers = #tpu.dot_dimension_numbers<[1], [0], [0], [1], [0, 0, 1, 1], [], []>} : vector<128x32xf32>, vector<32x64xf32>, vector<128x64xf32> -> vector<128x64xf32>
    %54 = arith.addf %48, %53 : vector<128x64xf32>
    %c0_63 = arith.constant 0 : index
    %c0_64 = arith.constant 0 : index
    %55 = vector.load %arg3[%c0_63, %c0_64] : memref<1x64xf32, #tpu.memory_space<vmem>>, vector<1x64xf32>
    %56 = vector.broadcast %55 : vector<1x64xf32> to vector<128x64xf32>
    %57 = arith.addf %54, %56 : vector<128x64xf32>
    %cst_65 = arith.constant 0.000000e+00 : f32
    %58 = vector.broadcast %cst_65 : f32 to vector<128x64xf32>
    %59 = arith.maximumf %57, %58 : vector<128x64xf32>
    %cst_66 = arith.constant 0.000000e+00 : f32
    %60 = vector.broadcast %cst_66 : f32 to vector<2x10x10x64xf32>
    %c0_67 = arith.constant 0 : index
    %c0_68 = arith.constant 0 : index
    %c0_69 = arith.constant 0 : index
    %c0_70 = arith.constant 0 : index
    %61 = vector.load %arg7[%c0_67, %c0_68, %c0_69, %c0_70] : memref<2x10x10x64xf32, #tpu.memory_space<vmem>>, vector<2x10x10x64xf32>
    tpu.vector_store %arg7[%c0_67, %c0_68, %c0_69, %c0_70], %60 {strides = array<i32>} : memref<2x10x10x64xf32, #tpu.memory_space<vmem>>, vector<2x10x10x64xf32>,
    %62 = vector.shape_cast %59 : vector<128x64xf32> to vector<2x8x8x64xf32>
    %c0_71 = arith.constant 0 : index
    %c1_72 = arith.constant 1 : index
    %c1_73 = arith.constant 1 : index
    %c0_74 = arith.constant 0 : index
    %63 = vector.load %arg7[%c0_71, %c1_72, %c1_73, %c0_74] : memref<2x10x10x64xf32, #tpu.memory_space<vmem>>, vector<2x8x8x64xf32>
    tpu.vector_store %arg7[%c0_71, %c1_72, %c1_73, %c0_74], %62 {strides = array<i32>} : memref<2x10x10x64xf32, #tpu.memory_space<vmem>>, vector<2x8x8x64xf32>,
    %cst_75 = arith.constant 0.000000e+00 : f32
    %64 = vector.broadcast %cst_75 : f32 to vector<128x64xf32>
    %c0_76 = arith.constant 0 : index
    %c0_77 = arith.constant 0 : index
    %c0_78 = arith.constant 0 : index
    %c0_79 = arith.constant 0 : index
    %65 = vector.load %arg7[%c0_76, %c0_77, %c0_78, %c0_79] : memref<2x10x10x64xf32, #tpu.memory_space<vmem>>, vector<2x8x8x64xf32>
    %66 = vector.shape_cast %65 : vector<2x8x8x64xf32> to vector<128x64xf32>
    %c0_80 = arith.constant 0 : index
    %c0_81 = arith.constant 0 : index
    %c0_82 = arith.constant 0 : index
    %67 = vector.load %arg4[%c0_80, %c0_81, %c0_82] : memref<9x64x64xf32, #tpu.memory_space<vmem>>, vector<1x64x64xf32>
    %68 = vector.shape_cast %67 : vector<1x64x64xf32> to vector<64x64xf32>
    %cst_83 = arith.constant dense<0.000000e+00> : vector<128x64xf32>
    %69 = tpu.matmul %66, %68, %cst_83 {dimension_numbers = #tpu.dot_dimension_numbers<[1], [0], [0], [1], [0, 0, 1, 1], [], []>} : vector<128x64xf32>, vector<64x64xf32>, vector<128x64xf32> -> vector<128x64xf32>
    %70 = arith.addf %64, %69 : vector<128x64xf32>
    %c0_84 = arith.constant 0 : index
    %c0_85 = arith.constant 0 : index
    %c1_86 = arith.constant 1 : index
    %c0_87 = arith.constant 0 : index
    %71 = vector.load %arg7[%c0_84, %c0_85, %c1_86, %c0_87] : memref<2x10x10x64xf32, #tpu.memory_space<vmem>>, vector<2x8x8x64xf32>
    %72 = vector.shape_cast %71 : vector<2x8x8x64xf32> to vector<128x64xf32>
    %c1_88 = arith.constant 1 : index
    %c0_89 = arith.constant 0 : index
    %c0_90 = arith.constant 0 : index
    %73 = vector.load %arg4[%c1_88, %c0_89, %c0_90] : memref<9x64x64xf32, #tpu.memory_space<vmem>>, vector<1x64x64xf32>
    %74 = vector.shape_cast %73 : vector<1x64x64xf32> to vector<64x64xf32>
    %cst_91 = arith.constant dense<0.000000e+00> : vector<128x64xf32>
    %75 = tpu.matmul %72, %74, %cst_91 {dimension_numbers = #tpu.dot_dimension_numbers<[1], [0], [0], [1], [0, 0, 1, 1], [], []>} : vector<128x64xf32>, vector<64x64xf32>, vector<128x64xf32> -> vector<128x64xf32>
    %76 = arith.addf %70, %75 : vector<128x64xf32>
    %c0_92 = arith.constant 0 : index
    %c0_93 = arith.constant 0 : index
    %c2_94 = arith.constant 2 : index
    %c0_95 = arith.constant 0 : index
    %77 = vector.load %arg7[%c0_92, %c0_93, %c2_94, %c0_95] : memref<2x10x10x64xf32, #tpu.memory_space<vmem>>, vector<2x8x8x64xf32>
    %78 = vector.shape_cast %77 : vector<2x8x8x64xf32> to vector<128x64xf32>
    %c2_96 = arith.constant 2 : index
    %c0_97 = arith.constant 0 : index
    %c0_98 = arith.constant 0 : index
    %79 = vector.load %arg4[%c2_96, %c0_97, %c0_98] : memref<9x64x64xf32, #tpu.memory_space<vmem>>, vector<1x64x64xf32>
    %80 = vector.shape_cast %79 : vector<1x64x64xf32> to vector<64x64xf32>
    %cst_99 = arith.constant dense<0.000000e+00> : vector<128x64xf32>
    %81 = tpu.matmul %78, %80, %cst_99 {dimension_numbers = #tpu.dot_dimension_numbers<[1], [0], [0], [1], [0, 0, 1, 1], [], []>} : vector<128x64xf32>, vector<64x64xf32>, vector<128x64xf32> -> vector<128x64xf32>
    %82 = arith.addf %76, %81 : vector<128x64xf32>
    %c0_100 = arith.constant 0 : index
    %c1_101 = arith.constant 1 : index
    %c0_102 = arith.constant 0 : index
    %c0_103 = arith.constant 0 : index
    %83 = vector.load %arg7[%c0_100, %c1_101, %c0_102, %c0_103] : memref<2x10x10x64xf32, #tpu.memory_space<vmem>>, vector<2x8x8x64xf32>
    %84 = vector.shape_cast %83 : vector<2x8x8x64xf32> to vector<128x64xf32>
    %c3_104 = arith.constant 3 : index
    %c0_105 = arith.constant 0 : index
    %c0_106 = arith.constant 0 : index
    %85 = vector.load %arg4[%c3_104, %c0_105, %c0_106] : memref<9x64x64xf32, #tpu.memory_space<vmem>>, vector<1x64x64xf32>
    %86 = vector.shape_cast %85 : vector<1x64x64xf32> to vector<64x64xf32>
    %cst_107 = arith.constant dense<0.000000e+00> : vector<128x64xf32>
    %87 = tpu.matmul %84, %86, %cst_107 {dimension_numbers = #tpu.dot_dimension_numbers<[1], [0], [0], [1], [0, 0, 1, 1], [], []>} : vector<128x64xf32>, vector<64x64xf32>, vector<128x64xf32> -> vector<128x64xf32>
    %88 = arith.addf %82, %87 : vector<128x64xf32>
    %c0_108 = arith.constant 0 : index
    %c1_109 = arith.constant 1 : index
    %c1_110 = arith.constant 1 : index
    %c0_111 = arith.constant 0 : index
    %89 = vector.load %arg7[%c0_108, %c1_109, %c1_110, %c0_111] : memref<2x10x10x64xf32, #tpu.memory_space<vmem>>, vector<2x8x8x64xf32>
    %90 = vector.shape_cast %89 : vector<2x8x8x64xf32> to vector<128x64xf32>
    %c4_112 = arith.constant 4 : index
    %c0_113 = arith.constant 0 : index
    %c0_114 = arith.constant 0 : index
    %91 = vector.load %arg4[%c4_112, %c0_113, %c0_114] : memref<9x64x64xf32, #tpu.memory_space<vmem>>, vector<1x64x64xf32>
    %92 = vector.shape_cast %91 : vector<1x64x64xf32> to vector<64x64xf32>
    %cst_115 = arith.constant dense<0.000000e+00> : vector<128x64xf32>
    %93 = tpu.matmul %90, %92, %cst_115 {dimension_numbers = #tpu.dot_dimension_numbers<[1], [0], [0], [1], [0, 0, 1, 1], [], []>} : vector<128x64xf32>, vector<64x64xf32>, vector<128x64xf32> -> vector<128x64xf32>
    %94 = arith.addf %88, %93 : vector<128x64xf32>
    %c0_116 = arith.constant 0 : index
    %c1_117 = arith.constant 1 : index
    %c2_118 = arith.constant 2 : index
    %c0_119 = arith.constant 0 : index
    %95 = vector.load %arg7[%c0_116, %c1_117, %c2_118, %c0_119] : memref<2x10x10x64xf32, #tpu.memory_space<vmem>>, vector<2x8x8x64xf32>
    %96 = vector.shape_cast %95 : vector<2x8x8x64xf32> to vector<128x64xf32>
    %c5_120 = arith.constant 5 : index
    %c0_121 = arith.constant 0 : index
    %c0_122 = arith.constant 0 : index
    %97 = vector.load %arg4[%c5_120, %c0_121, %c0_122] : memref<9x64x64xf32, #tpu.memory_space<vmem>>, vector<1x64x64xf32>
    %98 = vector.shape_cast %97 : vector<1x64x64xf32> to vector<64x64xf32>
    %cst_123 = arith.constant dense<0.000000e+00> : vector<128x64xf32>
    %99 = tpu.matmul %96, %98, %cst_123 {dimension_numbers = #tpu.dot_dimension_numbers<[1], [0], [0], [1], [0, 0, 1, 1], [], []>} : vector<128x64xf32>, vector<64x64xf32>, vector<128x64xf32> -> vector<128x64xf32>
    %100 = arith.addf %94, %99 : vector<128x64xf32>
    %c0_124 = arith.constant 0 : index
    %c2_125 = arith.constant 2 : index
    %c0_126 = arith.constant 0 : index
    %c0_127 = arith.constant 0 : index
    %101 = vector.load %arg7[%c0_124, %c2_125, %c0_126, %c0_127] : memref<2x10x10x64xf32, #tpu.memory_space<vmem>>, vector<2x8x8x64xf32>
    %102 = vector.shape_cast %101 : vector<2x8x8x64xf32> to vector<128x64xf32>
    %c6_128 = arith.constant 6 : index
    %c0_129 = arith.constant 0 : index
    %c0_130 = arith.constant 0 : index
    %103 = vector.load %arg4[%c6_128, %c0_129, %c0_130] : memref<9x64x64xf32, #tpu.memory_space<vmem>>, vector<1x64x64xf32>
    %104 = vector.shape_cast %103 : vector<1x64x64xf32> to vector<64x64xf32>
    %cst_131 = arith.constant dense<0.000000e+00> : vector<128x64xf32>
    %105 = tpu.matmul %102, %104, %cst_131 {dimension_numbers = #tpu.dot_dimension_numbers<[1], [0], [0], [1], [0, 0, 1, 1], [], []>} : vector<128x64xf32>, vector<64x64xf32>, vector<128x64xf32> -> vector<128x64xf32>
    %106 = arith.addf %100, %105 : vector<128x64xf32>
    %c0_132 = arith.constant 0 : index
    %c2_133 = arith.constant 2 : index
    %c1_134 = arith.constant 1 : index
    %c0_135 = arith.constant 0 : index
    %107 = vector.load %arg7[%c0_132, %c2_133, %c1_134, %c0_135] : memref<2x10x10x64xf32, #tpu.memory_space<vmem>>, vector<2x8x8x64xf32>
    %108 = vector.shape_cast %107 : vector<2x8x8x64xf32> to vector<128x64xf32>
    %c7_136 = arith.constant 7 : index
    %c0_137 = arith.constant 0 : index
    %c0_138 = arith.constant 0 : index
    %109 = vector.load %arg4[%c7_136, %c0_137, %c0_138] : memref<9x64x64xf32, #tpu.memory_space<vmem>>, vector<1x64x64xf32>
    %110 = vector.shape_cast %109 : vector<1x64x64xf32> to vector<64x64xf32>
    %cst_139 = arith.constant dense<0.000000e+00> : vector<128x64xf32>
    %111 = tpu.matmul %108, %110, %cst_139 {dimension_numbers = #tpu.dot_dimension_numbers<[1], [0], [0], [1], [0, 0, 1, 1], [], []>} : vector<128x64xf32>, vector<64x64xf32>, vector<128x64xf32> -> vector<128x64xf32>
    %112 = arith.addf %106, %111 : vector<128x64xf32>
    %c0_140 = arith.constant 0 : index
    %c2_141 = arith.constant 2 : index
    %c2_142 = arith.constant 2 : index
    %c0_143 = arith.constant 0 : index
    %113 = vector.load %arg7[%c0_140, %c2_141, %c2_142, %c0_143] : memref<2x10x10x64xf32, #tpu.memory_space<vmem>>, vector<2x8x8x64xf32>
    %114 = vector.shape_cast %113 : vector<2x8x8x64xf32> to vector<128x64xf32>
    %c8_144 = arith.constant 8 : index
    %c0_145 = arith.constant 0 : index
    %c0_146 = arith.constant 0 : index
    %115 = vector.load %arg4[%c8_144, %c0_145, %c0_146] : memref<9x64x64xf32, #tpu.memory_space<vmem>>, vector<1x64x64xf32>
    %116 = vector.shape_cast %115 : vector<1x64x64xf32> to vector<64x64xf32>
    %cst_147 = arith.constant dense<0.000000e+00> : vector<128x64xf32>
    %117 = tpu.matmul %114, %116, %cst_147 {dimension_numbers = #tpu.dot_dimension_numbers<[1], [0], [0], [1], [0, 0, 1, 1], [], []>} : vector<128x64xf32>, vector<64x64xf32>, vector<128x64xf32> -> vector<128x64xf32>
    %118 = arith.addf %112, %117 : vector<128x64xf32>
    %c0_148 = arith.constant 0 : index
    %c0_149 = arith.constant 0 : index
    %119 = vector.load %arg5[%c0_148, %c0_149] : memref<1x64xf32, #tpu.memory_space<vmem>>, vector<1x64xf32>
    %120 = vector.broadcast %119 : vector<1x64xf32> to vector<128x64xf32>
    %121 = arith.addf %118, %120 : vector<128x64xf32>
    %cst_150 = arith.constant 0.000000e+00 : f32
    %122 = vector.broadcast %cst_150 : f32 to vector<128x64xf32>
    %123 = arith.maximumf %121, %122 : vector<128x64xf32>
    %124 = vector.shape_cast %123 : vector<128x64xf32> to vector<8x16x64xf32>
    %125 = vector.extract_strided_slice %124 {offsets = [0, 0, 0], sizes = [8, 8, 64], strides = [1, 1, 1]} : vector<8x16x64xf32> to vector<8x8x64xf32>
    %126 = vector.extract_strided_slice %124 {offsets = [0, 8, 0], sizes = [8, 8, 64], strides = [1, 1, 1]} : vector<8x16x64xf32> to vector<8x8x64xf32>
    %127 = arith.maximumf %125, %126 : vector<8x8x64xf32>
    %128 = vector.extract_strided_slice %127 {offsets = [0, 0, 0], sizes = [8, 8, 32], strides = [1, 1, 1]} : vector<8x8x64xf32> to vector<8x8x32xf32>
    %129 = vector.extract_strided_slice %127 {offsets = [0, 0, 32], sizes = [8, 8, 32], strides = [1, 1, 1]} : vector<8x8x64xf32> to vector<8x8x32xf32>
    %130 = arith.maximumf %128, %129 : vector<8x8x32xf32>
    %131 = vector.shape_cast %130 : vector<8x8x32xf32> to vector<64x32xf32>
    %c0_151 = arith.constant 0 : index
    %c0_152 = arith.constant 0 : index
    %132 = vector.load %arg8[%c0_151, %c0_152] : memref<64x32xf32, #tpu.memory_space<vmem>>, vector<64x32xf32>
    tpu.vector_store %arg8[%c0_151, %c0_152], %131 {strides = array<i32>} : memref<64x32xf32, #tpu.memory_space<vmem>>, vector<64x32xf32>,
    %c0_153 = arith.constant 0 : index
    %c0_154 = arith.constant 0 : index
    %133 = tpu.strided_load %arg8[%c0_153, %c0_154] {strides = array<i32: 2, 1>} : memref<64x32xf32, #tpu.memory_space<vmem>>, vector<32x32xf32>
    %c1_155 = arith.constant 1 : index
    %c0_156 = arith.constant 0 : index
    %134 = tpu.strided_load %arg8[%c1_155, %c0_156] {strides = array<i32: 2, 1>} : memref<64x32xf32, #tpu.memory_space<vmem>>, vector<32x32xf32>
    %135 = arith.maximumf %133, %134 : vector<32x32xf32>
    %c0_157 = arith.constant 0 : index
    %c0_158 = arith.constant 0 : index
    %136 = vector.load %arg6[%c0_157, %c0_158] : memref<32x32xf32, #tpu.memory_space<vmem>>, vector<32x32xf32>
    tpu.vector_store %arg6[%c0_157, %c0_158], %135 {strides = array<i32>} : memref<32x32xf32, #tpu.memory_space<vmem>>, vector<32x32xf32>,
    return
  }
  func.func @transform_0(%arg0: i32) -> (i32, i32, i32, i32) {
    %c0_i32 = arith.constant 0 : i32
    %c0_i32_0 = arith.constant 0 : i32
    %c0_i32_1 = arith.constant 0 : i32
    %c0_i32_2 = arith.constant 0 : i32
    %c0_i32_3 = arith.constant 0 : i32
    return %c0_i32, %c0_i32_0, %c0_i32_1, %c0_i32_2 : i32, i32, i32, i32
  }
  func.func @transform_1(%arg0: i32) -> (i32, i32, i32) {
    %c0_i32 = arith.constant 0 : i32
    %c0_i32_0 = arith.constant 0 : i32
    %c0_i32_1 = arith.constant 0 : i32
    %c0_i32_2 = arith.constant 0 : i32
    return %c0_i32, %c0_i32_0, %c0_i32_1 : i32, i32, i32
  }
  func.func @transform_2(%arg0: i32) -> (i32, i32) {
    %c0_i32 = arith.constant 0 : i32
    %c0_i32_0 = arith.constant 0 : i32
    %c0_i32_1 = arith.constant 0 : i32
    return %c0_i32, %c0_i32_0 : i32, i32
  }
  func.func @transform_3(%arg0: i32) -> (i32, i32, i32) {
    %c0_i32 = arith.constant 0 : i32
    %c0_i32_0 = arith.constant 0 : i32
    %c0_i32_1 = arith.constant 0 : i32
    %c0_i32_2 = arith.constant 0 : i32
    return %c0_i32, %c0_i32_0, %c0_i32_1 : i32, i32, i32
  }
  func.func @transform_4(%arg0: i32) -> (i32, i32) {
    %c0_i32 = arith.constant 0 : i32
    %c0_i32_0 = arith.constant 0 : i32
    %c0_i32_1 = arith.constant 0 : i32
    return %c0_i32, %c0_i32_0 : i32, i32
  }
  func.func @transform_5(%arg0: i32) -> (i32, i32) {
    %c0_i32 = arith.constant 0 : i32
    %c0_i32_0 = arith.constant 0 : i32
    %c0_i32_1 = arith.constant 0 : i32
    return %c0_i32, %c0_i32_0 : i32, i32
  }
}

</mosaic_0001>

<llo_original>
// kernel: tpu_custom_call.1
$region0: #{tpu_custom_call.1}
  #allocation0 [shape = 'u32[]', space=smem, size = 0x4, offset = 0x4, fixed_abs, tag = 'smem constant byte address 0x4 - core index']
  #allocation1 [shape = 'u32[72,128]{1,0:T(1,128)}', space=vmem, size = 0x9000, scoped, tag = 'internal scratch']
  #allocation2 [shape = 'f32[2,10,10,64]{3,2,1,0:T(8,128)}', space=vmem, size = 0x28000, scoped, tag = 'scratch operand']
  #allocation3 [shape = 'f32[64,32]{1,0:T(8,128)}', space=vmem, size = 0x8000, scoped, tag = 'scratch operand']
  %s0 = inlined_call_operand.vmem [shape: f32[2,10,10,32], index: 0, kind: input, shape index: {}]
  %s1 = inlined_call_operand.vmem [shape: f32[9,32,64], index: 1, kind: input, shape index: {}]
  %s2 = inlined_call_operand.vmem [shape: f32[1,64], index: 2, kind: input, shape index: {}]
  %s3 = inlined_call_operand.hbm [shape: f32[9,64,64], index: 3, kind: input, shape index: {}]
  %s4 = inlined_call_operand.vmem [shape: f32[1,64], index: 4, kind: input, shape index: {}]
  %s5 = inlined_call_operand.hbm [shape: f32[32,32], index: 5, kind: output, shape index: {}]
  %s6 = sld [smem:[#allocation0]]
  $region34: #{tpu_custom_call.1} parent=0
    _
  %s8 = ssub.s32 1, %s6
  %s9 = scalar_select 0, %s8, %s6
  $region1: #{tpu_custom_call.1} parent=0
    #allocation4 [shape = 'u8[294912]{0}', space=vmem, size = 0x48000, scoped, tag = 'input window, operand 3, single buffered']
    #allocation5 [shape = 's32[1]{0}', space=sflag, size = 0x4, scoped, tag = 'scoped memory for tpu_custom_call.1']
    #allocation6 [shape = 's32[1]{0}', space=sflag, size = 0x4, scoped, tag = 'scoped memory for tpu_custom_call.1']
    #allocation7 [shape = 'u8[16384]{0}', space=vmem, size = 0x4000, scoped, tag = 'output window, operand 0, single buffered']
    %10 = vsyncpa [#allocation5], 0
    %11 = vsyncpa [#allocation6], 0
    // Predicated region
    $region2: #{tpu_custom_call.1} parent=1 // pred_check
      _
    $region3: #{tpu_custom_call.1} parent=1 // pred_check_branch
      %13 = sbr.rel (0) target = $region5
    $region4: #{tpu_custom_call.1} parent=1 // pred_region
      _
    $region5: #{tpu_custom_call.1} parent=1 // pred_fallthru
      _
    // Predicated region
    $region6: #{tpu_custom_call.1} parent=1 // pred_check
      _
    $region7: #{tpu_custom_call.1} parent=1 // pred_check_branch
      %15 = sbr.rel (0) target = $region9
    $region8: #{tpu_custom_call.1} parent=1 // pred_region
      _
    $region9: #{tpu_custom_call.1} parent=1 // pred_fallthru
      _
    // Predicated region
    $region10: #{tpu_custom_call.1} parent=1 // pred_check
      _
    $region11: #{tpu_custom_call.1} parent=1 // pred_check_branch
      %17 = sbr.rel (0) target = $region13
    $region12: #{tpu_custom_call.1} parent=1 // pred_region
      _
    $region13: #{tpu_custom_call.1} parent=1 // pred_fallthru
      _
    // Predicated region
    $region14: #{tpu_custom_call.1} parent=1 // pred_check
      _
    $region15: #{tpu_custom_call.1} parent=1 // pred_check_branch
      %19 = sbr.rel (0) target = $region17
    $region16: #{tpu_custom_call.1} parent=1 // pred_region
      %21 = vsyncadd [#allocation5], 0
      %s22 = sshll.u32 %s3, 4
      %s23 = int_to_ptr.hbm [resolvable:$true] %s22
      %s24 = sshll.u32 [#allocation4], 4
      %s25 = int_to_ptr.vmem [resolvable:$true] %s24
      %30 = dma.hbm_to_vmem [thread:$0]  %s23, 9216, %s25, [#allocation5], 128, 128, 8
    $region17: #{tpu_custom_call.1} parent=1 // pred_fallthru
      _
    // Predicated region
    $region18: #{tpu_custom_call.1} parent=1 // pred_check
      _
    $region19: #{tpu_custom_call.1} parent=1 // pred_check_branch
      %32 = sbr.rel (0) target = $region21
    $region20: #{tpu_custom_call.1} parent=1 // pred_region
      _
    $region21: #{tpu_custom_call.1} parent=1 // pred_fallthru
      _
    // Predicated region
    $region22: #{tpu_custom_call.1} parent=1 // pred_check
      _
    $region23: #{tpu_custom_call.1} parent=1 // pred_check_branch
      %34 = sbr.rel (0) target = $region25
    $region24: #{tpu_custom_call.1} parent=1 // pred_region
      %36 = dma.done [#allocation5], 9216
    $region25: #{tpu_custom_call.1} parent=1 // pred_fallthru
      _
    %v37 = vld [vmem:[%s0] sm:$0xff]
    %v38 = vld [vmem:[%s0 + $0x10] sm:$0xff]
    %v39 = vld [vmem:[%s0 + $0x20] sm:$0xff]
    %v40 = vld [vmem:[%s0 + $0x30] sm:$0xff]
    %v41 = vld [vmem:[%s0 + $0x40] sm:$0xff]
    %v42 = vld [vmem:[%s0 + $0x50] sm:$0xff]
    %v43 = vld [vmem:[%s0 + $0x60] sm:$0xff]
    %v44 = vld [vmem:[%s0 + $0x70] sm:$0xff]
    %v45 = vld [vmem:[%s0 + $0xa0] sm:$0xff]
    %v46 = vld [vmem:[%s0 + $0xb0] sm:$0xff]
    %v47 = vld [vmem:[%s0 + $0xc0] sm:$0xff]
    %v48 = vld [vmem:[%s0 + $0xd0] sm:$0xff]
    %v49 = vld [vmem:[%s0 + $0xe0] sm:$0xff]
    %v50 = vld [vmem:[%s0 + $0xf0] sm:$0xff]
    %v51 = vld [vmem:[%s0 + $0x100] sm:$0xff]
    %v52 = vld [vmem:[%s0 + $0x110] sm:$0xff]
    %v53 = vld [vmem:[%s1] sm:$0xff]
    %v54 = vld [vmem:[%s1 + $0x8] sm:$0xff]
    %v55 = vld [vmem:[%s1 + $0x10] sm:$0xff]
    %v56 = vld [vmem:[%s1 + $0x18] sm:$0xff]
    %v57 = vld [vmem:[%s0 + $0x1] sm:$0xff]
    %v58 = vld [vmem:[%s0 + $0x11] sm:$0xff]
    %v59 = vld [vmem:[%s0 + $0x21] sm:$0xff]
    %v60 = vld [vmem:[%s0 + $0x31] sm:$0xff]
    %v61 = vld [vmem:[%s0 + $0x41] sm:$0xff]
    %v62 = vld [vmem:[%s0 + $0x51] sm:$0xff]
    %v63 = vld [vmem:[%s0 + $0x61] sm:$0xff]
    %v64 = vld [vmem:[%s0 + $0x71] sm:$0xff]
    %v65 = vld [vmem:[%s0 + $0xa1] sm:$0xff]
    %v66 = vld [vmem:[%s0 + $0xb1] sm:$0xff]
    %v67 = vld [vmem:[%s0 + $0xc1] sm:$0xff]
    %v68 = vld [vmem:[%s0 + $0xd1] sm:$0xff]
    %v69 = vld [vmem:[%s0 + $0xe1] sm:$0xff]
    %v70 = vld [vmem:[%s0 + $0xf1] sm:$0xff]
    %v71 = vld [vmem:[%s0 + $0x101] sm:$0xff]
    %v72 = vld [vmem:[%s0 + $0x111] sm:$0xff]
    %s73 = scalar_lea.vmem %s1, 32
    %v74 = vld [vmem:[%s73] sm:$0xff]
    %v75 = vld [vmem:[%s73 + $0x8] sm:$0xff]
    %v76 = vld [vmem:[%s73 + $0x10] sm:$0xff]
    %v77 = vld [vmem:[%s73 + $0x18] sm:$0xff]
    %vm78 = vcmask 261120
    %v80 = vsel %vm78, %v57, 0
    %v83 = vsel %vm78, %v58, 0
    %v86 = vsel %vm78, %v59, 0
    %v89 = vsel %vm78, %v60, 0
    %v92 = vsel %vm78, %v61, 0
    %v95 = vsel %vm78, %v62, 0
    %v98 = vsel %vm78, %v63, 0
    %v101 = vsel %vm78, %v64, 0
    %v104 = vsel %vm78, %v65, 0
    %v107 = vsel %vm78, %v66, 0
    %v110 = vsel %vm78, %v67, 0
    %v113 = vsel %vm78, %v68, 0
    %v116 = vsel %vm78, %v69, 0
    %v119 = vsel %vm78, %v70, 0
    %v122 = vsel %vm78, %v71, 0
    %v125 = vsel %vm78, %v72, 0
    %127 = vmatpush.msra.mxu0 0.0
    %128 = vmatpush.msra.mxu0 0.0
    %129 = vmatpush.msra.mxu0 0.0
    %130 = vmatpush.msra.mxu0 0.0
    %131 = vmatpush.msra.mxu0 0.0
    %132 = vmatpush.msra.mxu0 0.0
    %133 = vmatpush.msra.mxu0 0.0
    %134 = vmatpush.msra.mxu0 0.0
    %135 = vmatpush.msra.mxu0 0.0
    %136 = vmatpush.msra.mxu0 0.0
    %137 = vmatpush.msra.mxu0 0.0
    %138 = vmatpush.msra.mxu0 0.0
    %139 = vmatpush.msra.mxu0 %v77
    %140 = vmatpush.msra.mxu0 %v76
    %141 = vmatpush.msra.mxu0 %v75
    %142 = vmatpush.msra.mxu0 %v74
    %143 = vmatmul.f32.gmra.mxu0 %v80
    %v144 = vpop.f32.mrf.mxu0
    %v145 = vadd.f32 0.0, %v144
    %146 = vmatmul.f32.gmra.mxu0 %v83
    %v147 = vpop.f32.mrf.mxu0
    %v148 = vadd.f32 0.0, %v147
    %149 = vmatmul.f32.gmra.mxu0 %v86
    %v150 = vpop.f32.mrf.mxu0
    %v151 = vadd.f32 0.0, %v150
    %152 = vmatmul.f32.gmra.mxu0 %v89
    %v153 = vpop.f32.mrf.mxu0
    %v154 = vadd.f32 0.0, %v153
    %155 = vmatmul.f32.gmra.mxu0 %v92
    %v156 = vpop.f32.mrf.mxu0
    %v157 = vadd.f32 0.0, %v156
    %158 = vmatmul.f32.gmra.mxu0 %v95
    %v159 = vpop.f32.mrf.mxu0
    %v160 = vadd.f32 0.0, %v159
    %161 = vmatmul.f32.gmra.mxu0 %v98
    %v162 = vpop.f32.mrf.mxu0
    %v163 = vadd.f32 0.0, %v162
    %164 = vmatmul.f32.gmra.mxu0 %v101
    %v165 = vpop.f32.mrf.mxu0
    %v166 = vadd.f32 0.0, %v165
    %167 = vmatmul.f32.gmra.mxu0 %v104
    %v168 = vpop.f32.mrf.mxu0
    %v169 = vadd.f32 0.0, %v168
    %170 = vmatmul.f32.gmra.mxu0 %v107
    %v171 = vpop.f32.mrf.mxu0
    %v172 = vadd.f32 0.0, %v171
    %173 = vmatmul.f32.gmra.mxu0 %v110
    %v174 = vpop.f32.mrf.mxu0
    %v175 = vadd.f32 0.0, %v174
    %176 = vmatmul.f32.gmra.mxu0 %v113
    %v177 = vpop.f32.mrf.mxu0
    %v178 = vadd.f32 0.0, %v177
    %179 = vmatmul.f32.gmra.mxu0 %v116
    %v180 = vpop.f32.mrf.mxu0
    %v181 = vadd.f32 0.0, %v180
    %182 = vmatmul.f32.gmra.mxu0 %v119
    %v183 = vpop.f32.mrf.mxu0
    %v184 = vadd.f32 0.0, %v183
    %185 = vmatmul.f32.gmra.mxu0 %v122
    %v186 = vpop.f32.mrf.mxu0
    %v187 = vadd.f32 0.0, %v186
    %188 = vmatmul.f32.gmra.mxu0 %v125
    %v189 = vpop.f32.mrf.mxu0
    %v190 = vadd.f32 0.0, %v189
    %191 = vdwg.mxu0
    %v193 = vsel %vm78, %v37, 0
    %v196 = vsel %vm78, %v38, 0
    %v199 = vsel %vm78, %v39, 0
    %v202 = vsel %vm78, %v40, 0
    %v205 = vsel %vm78, %v41, 0
    %v208 = vsel %vm78, %v42, 0
    %v211 = vsel %vm78, %v43, 0
    %v214 = vsel %vm78, %v44, 0
    %v217 = vsel %vm78, %v45, 0
    %v220 = vsel %vm78, %v46, 0
    %v223 = vsel %vm78, %v47, 0
    %v226 = vsel %vm78, %v48, 0
    %v229 = vsel %vm78, %v49, 0
    %v232 = vsel %vm78, %v50, 0
    %v235 = vsel %vm78, %v51, 0
    %v238 = vsel %vm78, %v52, 0
    %240 = vmatpush.msra.mxu0 0.0
    %241 = vmatpush.msra.mxu0 0.0
    %242 = vmatpush.msra.mxu0 0.0
    %243 = vmatpush.msra.mxu0 0.0
    %244 = vmatpush.msra.mxu0 0.0
    %245 = vmatpush.msra.mxu0 0.0
    %246 = vmatpush.msra.mxu0 0.0
    %247 = vmatpush.msra.mxu0 0.0
    %248 = vmatpush.msra.mxu0 0.0
    %249 = vmatpush.msra.mxu0 0.0
    %250 = vmatpush.msra.mxu0 0.0
    %251 = vmatpush.msra.mxu0 0.0
    %252 = vmatpush.msra.mxu0 %v56
    %253 = vmatpush.msra.mxu0 %v55
    %254 = vmatpush.msra.mxu0 %v54
    %255 = vmatpush.msra.mxu0 %v53
    %256 = vmatmul.f32.gmra.mxu0 %v193
    %v257 = vpop.f32.mrf.mxu0
    %v258 = vadd.f32 %v145, %v257
    %259 = vmatmul.f32.gmra.mxu0 %v196
    %v260 = vpop.f32.mrf.mxu0
    %v261 = vadd.f32 %v148, %v260
    %262 = vmatmul.f32.gmra.mxu0 %v199
    %v263 = vpop.f32.mrf.mxu0
    %v264 = vadd.f32 %v151, %v263
    %265 = vmatmul.f32.gmra.mxu0 %v202
    %v266 = vpop.f32.mrf.mxu0
    %v267 = vadd.f32 %v154, %v266
    %268 = vmatmul.f32.gmra.mxu0 %v205
    %v269 = vpop.f32.mrf.mxu0
    %v270 = vadd.f32 %v157, %v269
    %271 = vmatmul.f32.gmra.mxu0 %v208
    %v272 = vpop.f32.mrf.mxu0
    %v273 = vadd.f32 %v160, %v272
    %274 = vmatmul.f32.gmra.mxu0 %v211
    %v275 = vpop.f32.mrf.mxu0
    %v276 = vadd.f32 %v163, %v275
    %277 = vmatmul.f32.gmra.mxu0 %v214
    %v278 = vpop.f32.mrf.mxu0
    %v279 = vadd.f32 %v166, %v278
    %280 = vmatmul.f32.gmra.mxu0 %v217
    %v281 = vpop.f32.mrf.mxu0
    %v282 = vadd.f32 %v169, %v281
    %283 = vmatmul.f32.gmra.mxu0 %v220
    %v284 = vpop.f32.mrf.mxu0
    %v285 = vadd.f32 %v172, %v284
    %286 = vmatmul.f32.gmra.mxu0 %v223
    %v287 = vpop.f32.mrf.mxu0
    %v288 = vadd.f32 %v175, %v287
    %289 = vmatmul.f32.gmra.mxu0 %v226
    %v290 = vpop.f32.mrf.mxu0
    %v291 = vadd.f32 %v178, %v290
    %292 = vmatmul.f32.gmra.mxu0 %v229
    %v293 = vpop.f32.mrf.mxu0
    %v294 = vadd.f32 %v181, %v293
    %295 = vmatmul.f32.gmra.mxu0 %v232
    %v296 = vpop.f32.mrf.mxu0
    %v297 = vadd.f32 %v184, %v296
    %298 = vmatmul.f32.gmra.mxu0 %v235
    %v299 = vpop.f32.mrf.mxu0
    %v300 = vadd.f32 %v187, %v299
    %301 = vmatmul.f32.gmra.mxu0 %v238
    %v302 = vpop.f32.mrf.mxu0
    %v303 = vadd.f32 %v190, %v302
    %304 = vdwg.mxu0
    %v305 = vld [vmem:[%s0 + $0x2] sm:$0xff]
    %v306 = vld [vmem:[%s0 + $0x12] sm:$0xff]
    %v307 = vld [vmem:[%s0 + $0x22] sm:$0xff]
    %v308 = vld [vmem:[%s0 + $0x32] sm:$0xff]
    %v309 = vld [vmem:[%s0 + $0x42] sm:$0xff]
    %v310 = vld [vmem:[%s0 + $0x52] sm:$0xff]
    %v311 = vld [vmem:[%s0 + $0x62] sm:$0xff]
    %v312 = vld [vmem:[%s0 + $0x72] sm:$0xff]
    %v313 = vld [vmem:[%s0 + $0xa2] sm:$0xff]
    %v314 = vld [vmem:[%s0 + $0xb2] sm:$0xff]
    %v315 = vld [vmem:[%s0 + $0xc2] sm:$0xff]
    %v316 = vld [vmem:[%s0 + $0xd2] sm:$0xff]
    %v317 = vld [vmem:[%s0 + $0xe2] sm:$0xff]
    %v318 = vld [vmem:[%s0 + $0xf2] sm:$0xff]
    %v319 = vld [vmem:[%s0 + $0x102] sm:$0xff]
    %v320 = vld [vmem:[%s0 + $0x112] sm:$0xff]
    %s321 = scalar_lea.vmem %s1, 64
    %v322 = vld [vmem:[%s321] sm:$0xff]
    %v323 = vld [vmem:[%s321 + $0x8] sm:$0xff]
    %v324 = vld [vmem:[%s321 + $0x10] sm:$0xff]
    %v325 = vld [vmem:[%s321 + $0x18] sm:$0xff]
    %v327 = vsel %vm78, %v305, 0
    %v330 = vsel %vm78, %v306, 0
    %v333 = vsel %vm78, %v307, 0
    %v336 = vsel %vm78, %v308, 0
    %v339 = vsel %vm78, %v309, 0
    %v342 = vsel %vm78, %v310, 0
    %v345 = vsel %vm78, %v311, 0
    %v348 = vsel %vm78, %v312, 0
    %v351 = vsel %vm78, %v313, 0
    %v354 = vsel %vm78, %v314, 0
    %v357 = vsel %vm78, %v315, 0
    %v360 = vsel %vm78, %v316, 0
    %v363 = vsel %vm78, %v317, 0
    %v366 = vsel %vm78, %v318, 0
    %v369 = vsel %vm78, %v319, 0
    %v372 = vsel %vm78, %v320, 0
    %374 = vmatpush.msra.mxu0 0.0
    %375 = vmatpush.msra.mxu0 0.0
    %376 = vmatpush.msra.mxu0 0.0
    %377 = vmatpush.msra.mxu0 0.0
    %378 = vmatpush.msra.mxu0 0.0
    %379 = vmatpush.msra.mxu0 0.0
    %380 = vmatpush.msra.mxu0 0.0
    %381 = vmatpush.msra.mxu0 0.0
    %382 = vmatpush.msra.mxu0 0.0
    %383 = vmatpush.msra.mxu0 0.0
    %384 = vmatpush.msra.mxu0 0.0
    %385 = vmatpush.msra.mxu0 0.0
    %386 = vmatpush.msra.mxu0 %v325
    %387 = vmatpush.msra.mxu0 %v324
    %388 = vmatpush.msra.mxu0 %v323
    %389 = vmatpush.msra.mxu0 %v322
    %390 = vmatmul.f32.gmra.mxu0 %v327
    %v391 = vpop.f32.mrf.mxu0
    %v392 = vadd.f32 0.0, %v391
    %393 = vmatmul.f32.gmra.mxu0 %v330
    %v394 = vpop.f32.mrf.mxu0
    %v395 = vadd.f32 0.0, %v394
    %396 = vmatmul.f32.gmra.mxu0 %v333
    %v397 = vpop.f32.mrf.mxu0
    %v398 = vadd.f32 0.0, %v397
    %399 = vmatmul.f32.gmra.mxu0 %v336
    %v400 = vpop.f32.mrf.mxu0
    %v401 = vadd.f32 0.0, %v400
    %402 = vmatmul.f32.gmra.mxu0 %v339
    %v403 = vpop.f32.mrf.mxu0
    %v404 = vadd.f32 0.0, %v403
    %405 = vmatmul.f32.gmra.mxu0 %v342
    %v406 = vpop.f32.mrf.mxu0
    %v407 = vadd.f32 0.0, %v406
    %408 = vmatmul.f32.gmra.mxu0 %v345
    %v409 = vpop.f32.mrf.mxu0
    %v410 = vadd.f32 0.0, %v409
    %411 = vmatmul.f32.gmra.mxu0 %v348
    %v412 = vpop.f32.mrf.mxu0
    %v413 = vadd.f32 0.0, %v412
    %414 = vmatmul.f32.gmra.mxu0 %v351
    %v415 = vpop.f32.mrf.mxu0
    %v416 = vadd.f32 0.0, %v415
    %417 = vmatmul.f32.gmra.mxu0 %v354
    %v418 = vpop.f32.mrf.mxu0
    %v419 = vadd.f32 0.0, %v418
    %420 = vmatmul.f32.gmra.mxu0 %v357
    %v421 = vpop.f32.mrf.mxu0
    %v422 = vadd.f32 0.0, %v421
    %423 = vmatmul.f32.gmra.mxu0 %v360
    %v424 = vpop.f32.mrf.mxu0
    %v425 = vadd.f32 0.0, %v424
    %426 = vmatmul.f32.gmra.mxu0 %v363
    %v427 = vpop.f32.mrf.mxu0
    %v428 = vadd.f32 0.0, %v427
    %429 = vmatmul.f32.gmra.mxu0 %v366
    %v430 = vpop.f32.mrf.mxu0
    %v431 = vadd.f32 0.0, %v430
    %432 = vmatmul.f32.gmra.mxu0 %v369
    %v433 = vpop.f32.mrf.mxu0
    %v434 = vadd.f32 0.0, %v433
    %435 = vmatmul.f32.gmra.mxu0 %v372
    %v436 = vpop.f32.mrf.mxu0
    %v437 = vadd.f32 0.0, %v436
    %438 = vdwg.mxu0
    %v439 = vadd.f32 %v258, %v392
    %v440 = vadd.f32 %v261, %v395
    %v441 = vadd.f32 %v264, %v398
    %v442 = vadd.f32 %v267, %v401
    %v443 = vadd.f32 %v270, %v404
    %v444 = vadd.f32 %v273, %v407
    %v445 = vadd.f32 %v276, %v410
    %v446 = vadd.f32 %v279, %v413
    %v447 = vadd.f32 %v282, %v416
    %v448 = vadd.f32 %v285, %v419
    %v449 = vadd.f32 %v288, %v422
    %v450 = vadd.f32 %v291, %v425
    %v451 = vadd.f32 %v294, %v428
    %v452 = vadd.f32 %v297, %v431
    %v453 = vadd.f32 %v300, %v434
    %v454 = vadd.f32 %v303, %v437
    %s455 = scalar_lea.vmem %s0, 16
    %v456 = vld [vmem:[%s455] sm:$0xff]
    %v457 = vld [vmem:[%s455 + $0x10] sm:$0xff]
    %v458 = vld [vmem:[%s455 + $0x20] sm:$0xff]
    %v459 = vld [vmem:[%s455 + $0x30] sm:$0xff]
    %v460 = vld [vmem:[%s455 + $0x40] sm:$0xff]
    %v461 = vld [vmem:[%s455 + $0x50] sm:$0xff]
    %v462 = vld [vmem:[%s455 + $0x60] sm:$0xff]
    %v463 = vld [vmem:[%s455 + $0x70] sm:$0xff]
    %v464 = vld [vmem:[%s455 + $0xa0] sm:$0xff]
    %v465 = vld [vmem:[%s455 + $0xb0] sm:$0xff]
    %v466 = vld [vmem:[%s455 + $0xc0] sm:$0xff]
    %v467 = vld [vmem:[%s455 + $0xd0] sm:$0xff]
    %v468 = vld [vmem:[%s455 + $0xe0] sm:$0xff]
    %v469 = vld [vmem:[%s455 + $0xf0] sm:$0xff]
    %v470 = vld [vmem:[%s455 + $0x100] sm:$0xff]
    %v471 = vld [vmem:[%s455 + $0x110] sm:$0xff]
    %s472 = scalar_lea.vmem %s1, 96
    %v473 = vld [vmem:[%s472] sm:$0xff]
    %v474 = vld [vmem:[%s472 + $0x8] sm:$0xff]
    %v475 = vld [vmem:[%s472 + $0x10] sm:$0xff]
    %v476 = vld [vmem:[%s472 + $0x18] sm:$0xff]
    %v478 = vsel %vm78, %v456, 0
    %v481 = vsel %vm78, %v457, 0
    %v484 = vsel %vm78, %v458, 0
    %v487 = vsel %vm78, %v459, 0
    %v490 = vsel %vm78, %v460, 0
    %v493 = vsel %vm78, %v461, 0
    %v496 = vsel %vm78, %v462, 0
    %v499 = vsel %vm78, %v463, 0
    %v502 = vsel %vm78, %v464, 0
    %v505 = vsel %vm78, %v465, 0
    %v508 = vsel %vm78, %v466, 0
    %v511 = vsel %vm78, %v467, 0
    %v514 = vsel %vm78, %v468, 0
    %v517 = vsel %vm78, %v469, 0
    %v520 = vsel %vm78, %v470, 0
    %v523 = vsel %vm78, %v471, 0
    %525 = vmatpush.msra.mxu0 0.0
    %526 = vmatpush.msra.mxu0 0.0
    %527 = vmatpush.msra.mxu0 0.0
    %528 = vmatpush.msra.mxu0 0.0
    %529 = vmatpush.msra.mxu0 0.0
    %530 = vmatpush.msra.mxu0 0.0
    %531 = vmatpush.msra.mxu0 0.0
    %532 = vmatpush.msra.mxu0 0.0
    %533 = vmatpush.msra.mxu0 0.0
    %534 = vmatpush.msra.mxu0 0.0
    %535 = vmatpush.msra.mxu0 0.0
    %536 = vmatpush.msra.mxu0 0.0
    %537 = vmatpush.msra.mxu0 %v476
    %538 = vmatpush.msra.mxu0 %v475
    %539 = vmatpush.msra.mxu0 %v474
    %540 = vmatpush.msra.mxu0 %v473
    %541 = vmatmul.f32.gmra.mxu0 %v478
    %v542 = vpop.f32.mrf.mxu0
    %v543 = vadd.f32 0.0, %v542
    %544 = vmatmul.f32.gmra.mxu0 %v481
    %v545 = vpop.f32.mrf.mxu0
    %v546 = vadd.f32 0.0, %v545
    %547 = vmatmul.f32.gmra.mxu0 %v484
    %v548 = vpop.f32.mrf.mxu0
    %v549 = vadd.f32 0.0, %v548
    %550 = vmatmul.f32.gmra.mxu0 %v487
    %v551 = vpop.f32.mrf.mxu0
    %v552 = vadd.f32 0.0, %v551
    %553 = vmatmul.f32.gmra.mxu0 %v490
    %v554 = vpop.f32.mrf.mxu0
    %v555 = vadd.f32 0.0, %v554
    %556 = vmatmul.f32.gmra.mxu0 %v493
    %v557 = vpop.f32.mrf.mxu0
    %v558 = vadd.f32 0.0, %v557
    %559 = vmatmul.f32.gmra.mxu0 %v496
    %v560 = vpop.f32.mrf.mxu0
    %v561 = vadd.f32 0.0, %v560
    %562 = vmatmul.f32.gmra.mxu0 %v499
    %v563 = vpop.f32.mrf.mxu0
    %v564 = vadd.f32 0.0, %v563
    %565 = vmatmul.f32.gmra.mxu0 %v502
    %v566 = vpop.f32.mrf.mxu0
    %v567 = vadd.f32 0.0, %v566
    %568 = vmatmul.f32.gmra.mxu0 %v505
    %v569 = vpop.f32.mrf.mxu0
    %v570 = vadd.f32 0.0, %v569
    %571 = vmatmul.f32.gmra.mxu0 %v508
    %v572 = vpop.f32.mrf.mxu0
    %v573 = vadd.f32 0.0, %v572
    %574 = vmatmul.f32.gmra.mxu0 %v511
    %v575 = vpop.f32.mrf.mxu0
    %v576 = vadd.f32 0.0, %v575
    %577 = vmatmul.f32.gmra.mxu0 %v514
    %v578 = vpop.f32.mrf.mxu0
    %v579 = vadd.f32 0.0, %v578
    %580 = vmatmul.f32.gmra.mxu0 %v517
    %v581 = vpop.f32.mrf.mxu0
    %v582 = vadd.f32 0.0, %v581
    %583 = vmatmul.f32.gmra.mxu0 %v520
    %v584 = vpop.f32.mrf.mxu0
    %v585 = vadd.f32 0.0, %v584
    %586 = vmatmul.f32.gmra.mxu0 %v523
    %v587 = vpop.f32.mrf.mxu0
    %v588 = vadd.f32 0.0, %v587
    %589 = vdwg.mxu0
    %v590 = vadd.f32 %v439, %v543
    %v591 = vadd.f32 %v440, %v546
    %v592 = vadd.f32 %v441, %v549
    %v593 = vadd.f32 %v442, %v552
    %v594 = vadd.f32 %v443, %v555
    %v595 = vadd.f32 %v444, %v558
    %v596 = vadd.f32 %v445, %v561
    %v597 = vadd.f32 %v446, %v564
    %v598 = vadd.f32 %v447, %v567
    %v599 = vadd.f32 %v448, %v570
    %v600 = vadd.f32 %v449, %v573
    %v601 = vadd.f32 %v450, %v576
    %v602 = vadd.f32 %v451, %v579
    %v603 = vadd.f32 %v452, %v582
    %v604 = vadd.f32 %v453, %v585
    %v605 = vadd.f32 %v454, %v588
    %v606 = vld [vmem:[%s455 + $0x1] sm:$0xff]
    %v607 = vld [vmem:[%s455 + $0x11] sm:$0xff]
    %v608 = vld [vmem:[%s455 + $0x21] sm:$0xff]
    %v609 = vld [vmem:[%s455 + $0x31] sm:$0xff]
    %v610 = vld [vmem:[%s455 + $0x41] sm:$0xff]
    %v611 = vld [vmem:[%s455 + $0x51] sm:$0xff]
    %v612 = vld [vmem:[%s455 + $0x61] sm:$0xff]
    %v613 = vld [vmem:[%s455 + $0x71] sm:$0xff]
    %v614 = vld [vmem:[%s455 + $0xa1] sm:$0xff]
    %v615 = vld [vmem:[%s455 + $0xb1] sm:$0xff]
    %v616 = vld [vmem:[%s455 + $0xc1] sm:$0xff]
    %v617 = vld [vmem:[%s455 + $0xd1] sm:$0xff]
    %v618 = vld [vmem:[%s455 + $0xe1] sm:$0xff]
    %v619 = vld [vmem:[%s455 + $0xf1] sm:$0xff]
    %v620 = vld [vmem:[%s455 + $0x101] sm:$0xff]
    %v621 = vld [vmem:[%s455 + $0x111] sm:$0xff]
    %s622 = scalar_lea.vmem %s1, 128
    %v623 = vld [vmem:[%s622] sm:$0xff]
    %v624 = vld [vmem:[%s622 + $0x8] sm:$0xff]
    %v625 = vld [vmem:[%s622 + $0x10] sm:$0xff]
    %v626 = vld [vmem:[%s622 + $0x18] sm:$0xff]
    %v628 = vsel %vm78, %v606, 0
    %v631 = vsel %vm78, %v607, 0
    %v634 = vsel %vm78, %v608, 0
    %v637 = vsel %vm78, %v609, 0
    %v640 = vsel %vm78, %v610, 0
    %v643 = vsel %vm78, %v611, 0
    %v646 = vsel %vm78, %v612, 0
    %v649 = vsel %vm78, %v613, 0
    %v652 = vsel %vm78, %v614, 0
    %v655 = vsel %vm78, %v615, 0
    %v658 = vsel %vm78, %v616, 0
    %v661 = vsel %vm78, %v617, 0
    %v664 = vsel %vm78, %v618, 0
    %v667 = vsel %vm78, %v619, 0
    %v670 = vsel %vm78, %v620, 0
    %v673 = vsel %vm78, %v621, 0
    %675 = vmatpush.msra.mxu0 0.0
    %676 = vmatpush.msra.mxu0 0.0
    %677 = vmatpush.msra.mxu0 0.0
    %678 = vmatpush.msra.mxu0 0.0
    %679 = vmatpush.msra.mxu0 0.0
    %680 = vmatpush.msra.mxu0 0.0
    %681 = vmatpush.msra.mxu0 0.0
    %682 = vmatpush.msra.mxu0 0.0
    %683 = vmatpush.msra.mxu0 0.0
    %684 = vmatpush.msra.mxu0 0.0
    %685 = vmatpush.msra.mxu0 0.0
    %686 = vmatpush.msra.mxu0 0.0
    %687 = vmatpush.msra.mxu0 %v626
    %688 = vmatpush.msra.mxu0 %v625
    %689 = vmatpush.msra.mxu0 %v624
    %690 = vmatpush.msra.mxu0 %v623
    %691 = vmatmul.f32.gmra.mxu0 %v628
    %v692 = vpop.f32.mrf.mxu0
    %v693 = vadd.f32 0.0, %v692
    %694 = vmatmul.f32.gmra.mxu0 %v631
    %v695 = vpop.f32.mrf.mxu0
    %v696 = vadd.f32 0.0, %v695
    %697 = vmatmul.f32.gmra.mxu0 %v634
    %v698 = vpop.f32.mrf.mxu0
    %v699 = vadd.f32 0.0, %v698
    %700 = vmatmul.f32.gmra.mxu0 %v637
    %v701 = vpop.f32.mrf.mxu0
    %v702 = vadd.f32 0.0, %v701
    %703 = vmatmul.f32.gmra.mxu0 %v640
    %v704 = vpop.f32.mrf.mxu0
    %v705 = vadd.f32 0.0, %v704
    %706 = vmatmul.f32.gmra.mxu0 %v643
    %v707 = vpop.f32.mrf.mxu0
    %v708 = vadd.f32 0.0, %v707
    %709 = vmatmul.f32.gmra.mxu0 %v646
    %v710 = vpop.f32.mrf.mxu0
    %v711 = vadd.f32 0.0, %v710
    %712 = vmatmul.f32.gmra.mxu0 %v649
    %v713 = vpop.f32.mrf.mxu0
    %v714 = vadd.f32 0.0, %v713
    %715 = vmatmul.f32.gmra.mxu0 %v652
    %v716 = vpop.f32.mrf.mxu0
    %v717 = vadd.f32 0.0, %v716
    %718 = vmatmul.f32.gmra.mxu0 %v655
    %v719 = vpop.f32.mrf.mxu0
    %v720 = vadd.f32 0.0, %v719
    %721 = vmatmul.f32.gmra.mxu0 %v658
    %v722 = vpop.f32.mrf.mxu0
    %v723 = vadd.f32 0.0, %v722
    %724 = vmatmul.f32.gmra.mxu0 %v661
    %v725 = vpop.f32.mrf.mxu0
    %v726 = vadd.f32 0.0, %v725
    %727 = vmatmul.f32.gmra.mxu0 %v664
    %v728 = vpop.f32.mrf.mxu0
    %v729 = vadd.f32 0.0, %v728
    %730 = vmatmul.f32.gmra.mxu0 %v667
    %v731 = vpop.f32.mrf.mxu0
    %v732 = vadd.f32 0.0, %v731
    %733 = vmatmul.f32.gmra.mxu0 %v670
    %v734 = vpop.f32.mrf.mxu0
    %v735 = vadd.f32 0.0, %v734
    %736 = vmatmul.f32.gmra.mxu0 %v673
    %v737 = vpop.f32.mrf.mxu0
    %v738 = vadd.f32 0.0, %v737
    %739 = vdwg.mxu0
    %v740 = vadd.f32 %v590, %v693
    %v741 = vadd.f32 %v591, %v696
    %v742 = vadd.f32 %v592, %v699
    %v743 = vadd.f32 %v593, %v702
    %v744 = vadd.f32 %v594, %v705
    %v745 = vadd.f32 %v595, %v708
    %v746 = vadd.f32 %v596, %v711
    %v747 = vadd.f32 %v597, %v714
    %v748 = vadd.f32 %v598, %v717
    %v749 = vadd.f32 %v599, %v720
    %v750 = vadd.f32 %v600, %v723
    %v751 = vadd.f32 %v601, %v726
    %v752 = vadd.f32 %v602, %v729
    %v753 = vadd.f32 %v603, %v732
    %v754 = vadd.f32 %v604, %v735
    %v755 = vadd.f32 %v605, %v738
    %v756 = vld [vmem:[%s455 + $0x2] sm:$0xff]
    %v757 = vld [vmem:[%s455 + $0x12] sm:$0xff]
    %v758 = vld [vmem:[%s455 + $0x22] sm:$0xff]
    %v759 = vld [vmem:[%s455 + $0x32] sm:$0xff]
    %v760 = vld [vmem:[%s455 + $0x42] sm:$0xff]
    %v761 = vld [vmem:[%s455 + $0x52] sm:$0xff]
    %v762 = vld [vmem:[%s455 + $0x62] sm:$0xff]
    %v763 = vld [vmem:[%s455 + $0x72] sm:$0xff]
    %v764 = vld [vmem:[%s455 + $0xa2] sm:$0xff]
    %v765 = vld [vmem:[%s455 + $0xb2] sm:$0xff]
    %v766 = vld [vmem:[%s455 + $0xc2] sm:$0xff]
    %v767 = vld [vmem:[%s455 + $0xd2] sm:$0xff]
    %v768 = vld [vmem:[%s455 + $0xe2] sm:$0xff]
    %v769 = vld [vmem:[%s455 + $0xf2] sm:$0xff]
    %v770 = vld [vmem:[%s455 + $0x102] sm:$0xff]
    %v771 = vld [vmem:[%s455 + $0x112] sm:$0xff]
    %s772 = scalar_lea.vmem %s1, 160
    %v773 = vld [vmem:[%s772] sm:$0xff]
    %v774 = vld [vmem:[%s772 + $0x8] sm:$0xff]
    %v775 = vld [vmem:[%s772 + $0x10] sm:$0xff]
    %v776 = vld [vmem:[%s772 + $0x18] sm:$0xff]
    %v778 = vsel %vm78, %v756, 0
    %v781 = vsel %vm78, %v757, 0
    %v784 = vsel %vm78, %v758, 0
    %v787 = vsel %vm78, %v759, 0
    %v790 = vsel %vm78, %v760, 0
    %v793 = vsel %vm78, %v761, 0
    %v796 = vsel %vm78, %v762, 0
    %v799 = vsel %vm78, %v763, 0
    %v802 = vsel %vm78, %v764, 0
    %v805 = vsel %vm78, %v765, 0
    %v808 = vsel %vm78, %v766, 0
    %v811 = vsel %vm78, %v767, 0
    %v814 = vsel %vm78, %v768, 0
    %v817 = vsel %vm78, %v769, 0
    %v820 = vsel %vm78, %v770, 0
    %v823 = vsel %vm78, %v771, 0
    %825 = vmatpush.msra.mxu0 0.0
    %826 = vmatpush.msra.mxu0 0.0
    %827 = vmatpush.msra.mxu0 0.0
    %828 = vmatpush.msra.mxu0 0.0
    %829 = vmatpush.msra.mxu0 0.0
    %830 = vmatpush.msra.mxu0 0.0
    %831 = vmatpush.msra.mxu0 0.0
    %832 = vmatpush.msra.mxu0 0.0
    %833 = vmatpush.msra.mxu0 0.0
    %834 = vmatpush.msra.mxu0 0.0
    %835 = vmatpush.msra.mxu0 0.0
    %836 = vmatpush.msra.mxu0 0.0
    %837 = vmatpush.msra.mxu0 %v776
    %838 = vmatpush.msra.mxu0 %v775
    %839 = vmatpush.msra.mxu0 %v774
    %840 = vmatpush.msra.mxu0 %v773
    %841 = vmatmul.f32.gmra.mxu0 %v778
    %v842 = vpop.f32.mrf.mxu0
    %v843 = vadd.f32 0.0, %v842
    %844 = vmatmul.f32.gmra.mxu0 %v781
    %v845 = vpop.f32.mrf.mxu0
    %v846 = vadd.f32 0.0, %v845
    %847 = vmatmul.f32.gmra.mxu0 %v784
    %v848 = vpop.f32.mrf.mxu0
    %v849 = vadd.f32 0.0, %v848
    %850 = vmatmul.f32.gmra.mxu0 %v787
    %v851 = vpop.f32.mrf.mxu0
    %v852 = vadd.f32 0.0, %v851
    %853 = vmatmul.f32.gmra.mxu0 %v790
    %v854 = vpop.f32.mrf.mxu0
    %v855 = vadd.f32 0.0, %v854
    %856 = vmatmul.f32.gmra.mxu0 %v793
    %v857 = vpop.f32.mrf.mxu0
    %v858 = vadd.f32 0.0, %v857
    %859 = vmatmul.f32.gmra.mxu0 %v796
    %v860 = vpop.f32.mrf.mxu0
    %v861 = vadd.f32 0.0, %v860
    %862 = vmatmul.f32.gmra.mxu0 %v799
    %v863 = vpop.f32.mrf.mxu0
    %v864 = vadd.f32 0.0, %v863
    %865 = vmatmul.f32.gmra.mxu0 %v802
    %v866 = vpop.f32.mrf.mxu0
    %v867 = vadd.f32 0.0, %v866
    %868 = vmatmul.f32.gmra.mxu0 %v805
    %v869 = vpop.f32.mrf.mxu0
    %v870 = vadd.f32 0.0, %v869
    %871 = vmatmul.f32.gmra.mxu0 %v808
    %v872 = vpop.f32.mrf.mxu0
    %v873 = vadd.f32 0.0, %v872
    %874 = vmatmul.f32.gmra.mxu0 %v811
    %v875 = vpop.f32.mrf.mxu0
    %v876 = vadd.f32 0.0, %v875
    %877 = vmatmul.f32.gmra.mxu0 %v814
    %v878 = vpop.f32.mrf.mxu0
    %v879 = vadd.f32 0.0, %v878
    %880 = vmatmul.f32.gmra.mxu0 %v817
    %v881 = vpop.f32.mrf.mxu0
    %v882 = vadd.f32 0.0, %v881
    %883 = vmatmul.f32.gmra.mxu0 %v820
    %v884 = vpop.f32.mrf.mxu0
    %v885 = vadd.f32 0.0, %v884
    %886 = vmatmul.f32.gmra.mxu0 %v823
    %v887 = vpop.f32.mrf.mxu0
    %v888 = vadd.f32 0.0, %v887
    %889 = vdwg.mxu0
    %v890 = vadd.f32 %v740, %v843
    %v891 = vadd.f32 %v741, %v846
    %v892 = vadd.f32 %v742, %v849
    %v893 = vadd.f32 %v743, %v852
    %v894 = vadd.f32 %v744, %v855
    %v895 = vadd.f32 %v745, %v858
    %v896 = vadd.f32 %v746, %v861
    %v897 = vadd.f32 %v747, %v864
    %v898 = vadd.f32 %v748, %v867
    %v899 = vadd.f32 %v749, %v870
    %v900 = vadd.f32 %v750, %v873
    %v901 = vadd.f32 %v751, %v876
    %v902 = vadd.f32 %v752, %v879
    %v903 = vadd.f32 %v753, %v882
    %v904 = vadd.f32 %v754, %v885
    %v905 = vadd.f32 %v755, %v888
    %s906 = scalar_lea.vmem %s0, 32
    %v907 = vld [vmem:[%s906] sm:$0xff]
    %v908 = vld [vmem:[%s906 + $0x10] sm:$0xff]
    %v909 = vld [vmem:[%s906 + $0x20] sm:$0xff]
    %v910 = vld [vmem:[%s906 + $0x30] sm:$0xff]
    %v911 = vld [vmem:[%s906 + $0x40] sm:$0xff]
    %v912 = vld [vmem:[%s906 + $0x50] sm:$0xff]
    %v913 = vld [vmem:[%s906 + $0x60] sm:$0xff]
    %v914 = vld [vmem:[%s906 + $0x70] sm:$0xff]
    %v915 = vld [vmem:[%s906 + $0xa0] sm:$0xff]
    %v916 = vld [vmem:[%s906 + $0xb0] sm:$0xff]
    %v917 = vld [vmem:[%s906 + $0xc0] sm:$0xff]
    %v918 = vld [vmem:[%s906 + $0xd0] sm:$0xff]
    %v919 = vld [vmem:[%s906 + $0xe0] sm:$0xff]
    %v920 = vld [vmem:[%s906 + $0xf0] sm:$0xff]
    %v921 = vld [vmem:[%s906 + $0x100] sm:$0xff]
    %v922 = vld [vmem:[%s906 + $0x110] sm:$0xff]
    %s923 = scalar_lea.vmem %s1, 192
    %v924 = vld [vmem:[%s923] sm:$0xff]
    %v925 = vld [vmem:[%s923 + $0x8] sm:$0xff]
    %v926 = vld [vmem:[%s923 + $0x10] sm:$0xff]
    %v927 = vld [vmem:[%s923 + $0x18] sm:$0xff]
    %v929 = vsel %vm78, %v907, 0
    %v932 = vsel %vm78, %v908, 0
    %v935 = vsel %vm78, %v909, 0
    %v938 = vsel %vm78, %v910, 0
    %v941 = vsel %vm78, %v911, 0
    %v944 = vsel %vm78, %v912, 0
    %v947 = vsel %vm78, %v913, 0
    %v950 = vsel %vm78, %v914, 0
    %v953 = vsel %vm78, %v915, 0
    %v956 = vsel %vm78, %v916, 0
    %v959 = vsel %vm78, %v917, 0
    %v962 = vsel %vm78, %v918, 0
    %v965 = vsel %vm78, %v919, 0
    %v968 = vsel %vm78, %v920, 0
    %v971 = vsel %vm78, %v921, 0
    %v974 = vsel %vm78, %v922, 0
    %976 = vmatpush.msra.mxu0 0.0
    %977 = vmatpush.msra.mxu0 0.0
    %978 = vmatpush.msra.mxu0 0.0
    %979 = vmatpush.msra.mxu0 0.0
    %980 = vmatpush.msra.mxu0 0.0
    %981 = vmatpush.msra.mxu0 0.0
    %982 = vmatpush.msra.mxu0 0.0
    %983 = vmatpush.msra.mxu0 0.0
    %984 = vmatpush.msra.mxu0 0.0
    %985 = vmatpush.msra.mxu0 0.0
    %986 = vmatpush.msra.mxu0 0.0
    %987 = vmatpush.msra.mxu0 0.0
    %988 = vmatpush.msra.mxu0 %v927
    %989 = vmatpush.msra.mxu0 %v926
    %990 = vmatpush.msra.mxu0 %v925
    %991 = vmatpush.msra.mxu0 %v924
    %992 = vmatmul.f32.gmra.mxu0 %v929
    %v993 = vpop.f32.mrf.mxu0
    %v994 = vadd.f32 0.0, %v993
    %995 = vmatmul.f32.gmra.mxu0 %v932
    %v996 = vpop.f32.mrf.mxu0
    %v997 = vadd.f32 0.0, %v996
    %998 = vmatmul.f32.gmra.mxu0 %v935
    %v999 = vpop.f32.mrf.mxu0
    %v1000 = vadd.f32 0.0, %v999
    %1001 = vmatmul.f32.gmra.mxu0 %v938
    %v1002 = vpop.f32.mrf.mxu0
    %v1003 = vadd.f32 0.0, %v1002
    %1004 = vmatmul.f32.gmra.mxu0 %v941
    %v1005 = vpop.f32.mrf.mxu0
    %v1006 = vadd.f32 0.0, %v1005
    %1007 = vmatmul.f32.gmra.mxu0 %v944
    %v1008 = vpop.f32.mrf.mxu0
    %v1009 = vadd.f32 0.0, %v1008
    %1010 = vmatmul.f32.gmra.mxu0 %v947
    %v1011 = vpop.f32.mrf.mxu0
    %v1012 = vadd.f32 0.0, %v1011
    %1013 = vmatmul.f32.gmra.mxu0 %v950
    %v1014 = vpop.f32.mrf.mxu0
    %v1015 = vadd.f32 0.0, %v1014
    %1016 = vmatmul.f32.gmra.mxu0 %v953
    %v1017 = vpop.f32.mrf.mxu0
    %v1018 = vadd.f32 0.0, %v1017
    %1019 = vmatmul.f32.gmra.mxu0 %v956
    %v1020 = vpop.f32.mrf.mxu0
    %v1021 = vadd.f32 0.0, %v1020
    %1022 = vmatmul.f32.gmra.mxu0 %v959
    %v1023 = vpop.f32.mrf.mxu0
    %v1024 = vadd.f32 0.0, %v1023
    %1025 = vmatmul.f32.gmra.mxu0 %v962
    %v1026 = vpop.f32.mrf.mxu0
    %v1027 = vadd.f32 0.0, %v1026
    %1028 = vmatmul.f32.gmra.mxu0 %v965
    %v1029 = vpop.f32.mrf.mxu0
    %v1030 = vadd.f32 0.0, %v1029
    %1031 = vmatmul.f32.gmra.mxu0 %v968
    %v1032 = vpop.f32.mrf.mxu0
    %v1033 = vadd.f32 0.0, %v1032
    %1034 = vmatmul.f32.gmra.mxu0 %v971
    %v1035 = vpop.f32.mrf.mxu0
    %v1036 = vadd.f32 0.0, %v1035
    %1037 = vmatmul.f32.gmra.mxu0 %v974
    %v1038 = vpop.f32.mrf.mxu0
    %v1039 = vadd.f32 0.0, %v1038
    %1040 = vdwg.mxu0
    %v1041 = vadd.f32 %v890, %v994
    %v1042 = vadd.f32 %v891, %v997
    %v1043 = vadd.f32 %v892, %v1000
    %v1044 = vadd.f32 %v893, %v1003
    %v1045 = vadd.f32 %v894, %v1006
    %v1046 = vadd.f32 %v895, %v1009
    %v1047 = vadd.f32 %v896, %v1012
    %v1048 = vadd.f32 %v897, %v1015
    %v1049 = vadd.f32 %v898, %v1018
    %v1050 = vadd.f32 %v899, %v1021
    %v1051 = vadd.f32 %v900, %v1024
    %v1052 = vadd.f32 %v901, %v1027
    %v1053 = vadd.f32 %v902, %v1030
    %v1054 = vadd.f32 %v903, %v1033
    %v1055 = vadd.f32 %v904, %v1036
    %v1056 = vadd.f32 %v905, %v1039
    %v1057 = vld [vmem:[%s906 + $0x1] sm:$0xff]
    %v1058 = vld [vmem:[%s906 + $0x11] sm:$0xff]
    %v1059 = vld [vmem:[%s906 + $0x21] sm:$0xff]
    %v1060 = vld [vmem:[%s906 + $0x31] sm:$0xff]
    %v1061 = vld [vmem:[%s906 + $0x41] sm:$0xff]
    %v1062 = vld [vmem:[%s906 + $0x51] sm:$0xff]
    %v1063 = vld [vmem:[%s906 + $0x61] sm:$0xff]
    %v1064 = vld [vmem:[%s906 + $0x71] sm:$0xff]
    %v1065 = vld [vmem:[%s906 + $0xa1] sm:$0xff]
    %v1066 = vld [vmem:[%s906 + $0xb1] sm:$0xff]
    %v1067 = vld [vmem:[%s906 + $0xc1] sm:$0xff]
    %v1068 = vld [vmem:[%s906 + $0xd1] sm:$0xff]
    %v1069 = vld [vmem:[%s906 + $0xe1] sm:$0xff]
    %v1070 = vld [vmem:[%s906 + $0xf1] sm:$0xff]
    %v1071 = vld [vmem:[%s906 + $0x101] sm:$0xff]
    %v1072 = vld [vmem:[%s906 + $0x111] sm:$0xff]
    %s1073 = scalar_lea.vmem %s1, 224
    %v1074 = vld [vmem:[%s1073] sm:$0xff]
    %v1075 = vld [vmem:[%s1073 + $0x8] sm:$0xff]
    %v1076 = vld [vmem:[%s1073 + $0x10] sm:$0xff]
    %v1077 = vld [vmem:[%s1073 + $0x18] sm:$0xff]
    %v1079 = vsel %vm78, %v1057, 0
    %v1082 = vsel %vm78, %v1058, 0
    %v1085 = vsel %vm78, %v1059, 0
    %v1088 = vsel %vm78, %v1060, 0
    %v1091 = vsel %vm78, %v1061, 0
    %v1094 = vsel %vm78, %v1062, 0
    %v1097 = vsel %vm78, %v1063, 0
    %v1100 = vsel %vm78, %v1064, 0
    %v1103 = vsel %vm78, %v1065, 0
    %v1106 = vsel %vm78, %v1066, 0
    %v1109 = vsel %vm78, %v1067, 0
    %v1112 = vsel %vm78, %v1068, 0
    %v1115 = vsel %vm78, %v1069, 0
    %v1118 = vsel %vm78, %v1070, 0
    %v1121 = vsel %vm78, %v1071, 0
    %v1124 = vsel %vm78, %v1072, 0
    %1126 = vmatpush.msra.mxu0 0.0
    %1127 = vmatpush.msra.mxu0 0.0
    %1128 = vmatpush.msra.mxu0 0.0
    %1129 = vmatpush.msra.mxu0 0.0
    %1130 = vmatpush.msra.mxu0 0.0
    %1131 = vmatpush.msra.mxu0 0.0
    %1132 = vmatpush.msra.mxu0 0.0
    %1133 = vmatpush.msra.mxu0 0.0
    %1134 = vmatpush.msra.mxu0 0.0
    %1135 = vmatpush.msra.mxu0 0.0
    %1136 = vmatpush.msra.mxu0 0.0
    %1137 = vmatpush.msra.mxu0 0.0
    %1138 = vmatpush.msra.mxu0 %v1077
    %1139 = vmatpush.msra.mxu0 %v1076
    %1140 = vmatpush.msra.mxu0 %v1075
    %1141 = vmatpush.msra.mxu0 %v1074
    %1142 = vmatmul.f32.gmra.mxu0 %v1079
    %v1143 = vpop.f32.mrf.mxu0
    %v1144 = vadd.f32 0.0, %v1143
    %1145 = vmatmul.f32.gmra.mxu0 %v1082
    %v1146 = vpop.f32.mrf.mxu0
    %v1147 = vadd.f32 0.0, %v1146
    %1148 = vmatmul.f32.gmra.mxu0 %v1085
    %v1149 = vpop.f32.mrf.mxu0
    %v1150 = vadd.f32 0.0, %v1149
    %1151 = vmatmul.f32.gmra.mxu0 %v1088
    %v1152 = vpop.f32.mrf.mxu0
    %v1153 = vadd.f32 0.0, %v1152
    %1154 = vmatmul.f32.gmra.mxu0 %v1091
    %v1155 = vpop.f32.mrf.mxu0
    %v1156 = vadd.f32 0.0, %v1155
    %1157 = vmatmul.f32.gmra.mxu0 %v1094
    %v1158 = vpop.f32.mrf.mxu0
    %v1159 = vadd.f32 0.0, %v1158
    %1160 = vmatmul.f32.gmra.mxu0 %v1097
    %v1161 = vpop.f32.mrf.mxu0
    %v1162 = vadd.f32 0.0, %v1161
    %1163 = vmatmul.f32.gmra.mxu0 %v1100
    %v1164 = vpop.f32.mrf.mxu0
    %v1165 = vadd.f32 0.0, %v1164
    %1166 = vmatmul.f32.gmra.mxu0 %v1103
    %v1167 = vpop.f32.mrf.mxu0
    %v1168 = vadd.f32 0.0, %v1167
    %1169 = vmatmul.f32.gmra.mxu0 %v1106
    %v1170 = vpop.f32.mrf.mxu0
    %v1171 = vadd.f32 0.0, %v1170
    %1172 = vmatmul.f32.gmra.mxu0 %v1109
    %v1173 = vpop.f32.mrf.mxu0
    %v1174 = vadd.f32 0.0, %v1173
    %1175 = vmatmul.f32.gmra.mxu0 %v1112
    %v1176 = vpop.f32.mrf.mxu0
    %v1177 = vadd.f32 0.0, %v1176
    %1178 = vmatmul.f32.gmra.mxu0 %v1115
    %v1179 = vpop.f32.mrf.mxu0
    %v1180 = vadd.f32 0.0, %v1179
    %1181 = vmatmul.f32.gmra.mxu0 %v1118
    %v1182 = vpop.f32.mrf.mxu0
    %v1183 = vadd.f32 0.0, %v1182
    %1184 = vmatmul.f32.gmra.mxu0 %v1121
    %v1185 = vpop.f32.mrf.mxu0
    %v1186 = vadd.f32 0.0, %v1185
    %1187 = vmatmul.f32.gmra.mxu0 %v1124
    %v1188 = vpop.f32.mrf.mxu0
    %v1189 = vadd.f32 0.0, %v1188
    %1190 = vdwg.mxu0
    %v1191 = vadd.f32 %v1041, %v1144
    %v1192 = vadd.f32 %v1042, %v1147
    %v1193 = vadd.f32 %v1043, %v1150
    %v1194 = vadd.f32 %v1044, %v1153
    %v1195 = vadd.f32 %v1045, %v1156
    %v1196 = vadd.f32 %v1046, %v1159
    %v1197 = vadd.f32 %v1047, %v1162
    %v1198 = vadd.f32 %v1048, %v1165
    %v1199 = vadd.f32 %v1049, %v1168
    %v1200 = vadd.f32 %v1050, %v1171
    %v1201 = vadd.f32 %v1051, %v1174
    %v1202 = vadd.f32 %v1052, %v1177
    %v1203 = vadd.f32 %v1053, %v1180
    %v1204 = vadd.f32 %v1054, %v1183
    %v1205 = vadd.f32 %v1055, %v1186
    %v1206 = vadd.f32 %v1056, %v1189
    %v1207 = vld [vmem:[%s906 + $0x2] sm:$0xff]
    %v1208 = vld [vmem:[%s906 + $0x12] sm:$0xff]
    %v1209 = vld [vmem:[%s906 + $0x22] sm:$0xff]
    %v1210 = vld [vmem:[%s906 + $0x32] sm:$0xff]
    %v1211 = vld [vmem:[%s906 + $0x42] sm:$0xff]
    %v1212 = vld [vmem:[%s906 + $0x52] sm:$0xff]
    %v1213 = vld [vmem:[%s906 + $0x62] sm:$0xff]
    %v1214 = vld [vmem:[%s906 + $0x72] sm:$0xff]
    %v1215 = vld [vmem:[%s906 + $0xa2] sm:$0xff]
    %v1216 = vld [vmem:[%s906 + $0xb2] sm:$0xff]
    %v1217 = vld [vmem:[%s906 + $0xc2] sm:$0xff]
    %v1218 = vld [vmem:[%s906 + $0xd2] sm:$0xff]
    %v1219 = vld [vmem:[%s906 + $0xe2] sm:$0xff]
    %v1220 = vld [vmem:[%s906 + $0xf2] sm:$0xff]
    %v1221 = vld [vmem:[%s906 + $0x102] sm:$0xff]
    %v1222 = vld [vmem:[%s906 + $0x112] sm:$0xff]
    %s1223 = scalar_lea.vmem %s1, 256
    %v1224 = vld [vmem:[%s1223] sm:$0xff]
    %v1225 = vld [vmem:[%s1223 + $0x8] sm:$0xff]
    %v1226 = vld [vmem:[%s1223 + $0x10] sm:$0xff]
    %v1227 = vld [vmem:[%s1223 + $0x18] sm:$0xff]
    %v1229 = vsel %vm78, %v1207, 0
    %v1232 = vsel %vm78, %v1208, 0
    %v1235 = vsel %vm78, %v1209, 0
    %v1238 = vsel %vm78, %v1210, 0
    %v1241 = vsel %vm78, %v1211, 0
    %v1244 = vsel %vm78, %v1212, 0
    %v1247 = vsel %vm78, %v1213, 0
    %v1250 = vsel %vm78, %v1214, 0
    %v1253 = vsel %vm78, %v1215, 0
    %v1256 = vsel %vm78, %v1216, 0
    %v1259 = vsel %vm78, %v1217, 0
    %v1262 = vsel %vm78, %v1218, 0
    %v1265 = vsel %vm78, %v1219, 0
    %v1268 = vsel %vm78, %v1220, 0
    %v1271 = vsel %vm78, %v1221, 0
    %v1274 = vsel %vm78, %v1222, 0
    %1276 = vmatpush.msra.mxu0 0.0
    %1277 = vmatpush.msra.mxu0 0.0
    %1278 = vmatpush.msra.mxu0 0.0
    %1279 = vmatpush.msra.mxu0 0.0
    %1280 = vmatpush.msra.mxu0 0.0
    %1281 = vmatpush.msra.mxu0 0.0
    %1282 = vmatpush.msra.mxu0 0.0
    %1283 = vmatpush.msra.mxu0 0.0
    %1284 = vmatpush.msra.mxu0 0.0
    %1285 = vmatpush.msra.mxu0 0.0
    %1286 = vmatpush.msra.mxu0 0.0
    %1287 = vmatpush.msra.mxu0 0.0
    %1288 = vmatpush.msra.mxu0 %v1227
    %1289 = vmatpush.msra.mxu0 %v1226
    %1290 = vmatpush.msra.mxu0 %v1225
    %1291 = vmatpush.msra.mxu0 %v1224
    %1292 = vmatmul.f32.gmra.mxu0 %v1229
    %v1293 = vpop.f32.mrf.mxu0
    %v1294 = vadd.f32 0.0, %v1293
    %1295 = vmatmul.f32.gmra.mxu0 %v1232
    %v1296 = vpop.f32.mrf.mxu0
    %v1297 = vadd.f32 0.0, %v1296
    %1298 = vmatmul.f32.gmra.mxu0 %v1235
    %v1299 = vpop.f32.mrf.mxu0
    %v1300 = vadd.f32 0.0, %v1299
    %1301 = vmatmul.f32.gmra.mxu0 %v1238
    %v1302 = vpop.f32.mrf.mxu0
    %v1303 = vadd.f32 0.0, %v1302
    %1304 = vmatmul.f32.gmra.mxu0 %v1241
    %v1305 = vpop.f32.mrf.mxu0
    %v1306 = vadd.f32 0.0, %v1305
    %1307 = vmatmul.f32.gmra.mxu0 %v1244
    %v1308 = vpop.f32.mrf.mxu0
    %v1309 = vadd.f32 0.0, %v1308
    %1310 = vmatmul.f32.gmra.mxu0 %v1247
    %v1311 = vpop.f32.mrf.mxu0
    %v1312 = vadd.f32 0.0, %v1311
    %1313 = vmatmul.f32.gmra.mxu0 %v1250
    %v1314 = vpop.f32.mrf.mxu0
    %v1315 = vadd.f32 0.0, %v1314
    %1316 = vmatmul.f32.gmra.mxu0 %v1253
    %v1317 = vpop.f32.mrf.mxu0
    %v1318 = vadd.f32 0.0, %v1317
    %1319 = vmatmul.f32.gmra.mxu0 %v1256
    %v1320 = vpop.f32.mrf.mxu0
    %v1321 = vadd.f32 0.0, %v1320
    %1322 = vmatmul.f32.gmra.mxu0 %v1259
    %v1323 = vpop.f32.mrf.mxu0
    %v1324 = vadd.f32 0.0, %v1323
    %1325 = vmatmul.f32.gmra.mxu0 %v1262
    %v1326 = vpop.f32.mrf.mxu0
    %v1327 = vadd.f32 0.0, %v1326
    %1328 = vmatmul.f32.gmra.mxu0 %v1265
    %v1329 = vpop.f32.mrf.mxu0
    %v1330 = vadd.f32 0.0, %v1329
    %1331 = vmatmul.f32.gmra.mxu0 %v1268
    %v1332 = vpop.f32.mrf.mxu0
    %v1333 = vadd.f32 0.0, %v1332
    %1334 = vmatmul.f32.gmra.mxu0 %v1271
    %v1335 = vpop.f32.mrf.mxu0
    %v1336 = vadd.f32 0.0, %v1335
    %1337 = vmatmul.f32.gmra.mxu0 %v1274
    %v1338 = vpop.f32.mrf.mxu0
    %v1339 = vadd.f32 0.0, %v1338
    %1340 = vdwg.mxu0
    %v1341 = vadd.f32 %v1191, %v1294
    %v1342 = vadd.f32 %v1192, %v1297
    %v1343 = vadd.f32 %v1193, %v1300
    %v1344 = vadd.f32 %v1194, %v1303
    %v1345 = vadd.f32 %v1195, %v1306
    %v1346 = vadd.f32 %v1196, %v1309
    %v1347 = vadd.f32 %v1197, %v1312
    %v1348 = vadd.f32 %v1198, %v1315
    %v1349 = vadd.f32 %v1199, %v1318
    %v1350 = vadd.f32 %v1200, %v1321
    %v1351 = vadd.f32 %v1201, %v1324
    %v1352 = vadd.f32 %v1202, %v1327
    %v1353 = vadd.f32 %v1203, %v1330
    %v1354 = vadd.f32 %v1204, %v1333
    %v1355 = vadd.f32 %v1205, %v1336
    %v1356 = vadd.f32 %v1206, %v1339
    %v1357 = vld [vmem:[%s2] sm:$0x1]
    %v1359 = vperm.slane %v1357, 0
    %v1361 = vadd.f32 %v1341, %v1359
    %v1362 = vadd.f32 %v1342, %v1359
    %v1363 = vadd.f32 %v1343, %v1359
    %v1364 = vadd.f32 %v1344, %v1359
    %v1365 = vadd.f32 %v1345, %v1359
    %v1366 = vadd.f32 %v1346, %v1359
    %v1367 = vadd.f32 %v1347, %v1359
    %v1368 = vadd.f32 %v1348, %v1359
    %v1369 = vadd.f32 %v1349, %v1359
    %v1370 = vadd.f32 %v1350, %v1359
    %v1371 = vadd.f32 %v1351, %v1359
    %v1372 = vadd.f32 %v1352, %v1359
    %v1373 = vadd.f32 %v1353, %v1359
    %v1374 = vadd.f32 %v1354, %v1359
    %v1375 = vadd.f32 %v1355, %v1359
    %v1376 = vadd.f32 %v1356, %v1359
    %v1377 = vmax.f32 %v1361, 0.0
    %v1378 = vmax.f32 %v1362, 0.0
    %v1379 = vmax.f32 %v1363, 0.0
    %v1380 = vmax.f32 %v1364, 0.0
    %v1381 = vmax.f32 %v1365, 0.0
    %v1382 = vmax.f32 %v1366, 0.0
    %v1383 = vmax.f32 %v1367, 0.0
    %v1384 = vmax.f32 %v1368, 0.0
    %v1385 = vmax.f32 %v1369, 0.0
    %v1386 = vmax.f32 %v1370, 0.0
    %v1387 = vmax.f32 %v1371, 0.0
    %v1388 = vmax.f32 %v1372, 0.0
    %v1389 = vmax.f32 %v1373, 0.0
    %v1390 = vmax.f32 %v1374, 0.0
    %v1391 = vmax.f32 %v1375, 0.0
    %v1392 = vmax.f32 %v1376, 0.0
    %vm1393 = vcmask 523264
    %1394 = vst.msk [vmem:[#allocation2] sm:$0xff] %vm1393, 0.0
    %vm1395 = vcmask 517120
    %1396 = vst.msk [vmem:[#allocation2 + $0x8] sm:$0x3] %vm1395, 0.0
    %1397 = vst.msk [vmem:[#allocation2 + $0x10] sm:$0xff] %vm1393, 0.0
    %1398 = vst.msk [vmem:[#allocation2 + $0x18] sm:$0x3] %vm1395, 0.0
    %1399 = vst.msk [vmem:[#allocation2 + $0x20] sm:$0xff] %vm1393, 0.0
    %1400 = vst.msk [vmem:[#allocation2 + $0x28] sm:$0x3] %vm1395, 0.0
    %1401 = vst.msk [vmem:[#allocation2 + $0x30] sm:$0xff] %vm1393, 0.0
    %1402 = vst.msk [vmem:[#allocation2 + $0x38] sm:$0x3] %vm1395, 0.0
    %1403 = vst.msk [vmem:[#allocation2 + $0x40] sm:$0xff] %vm1393, 0.0
    %1404 = vst.msk [vmem:[#allocation2 + $0x48] sm:$0x3] %vm1395, 0.0
    %1405 = vst.msk [vmem:[#allocation2 + $0x50] sm:$0xff] %vm1393, 0.0
    %1406 = vst.msk [vmem:[#allocation2 + $0x58] sm:$0x3] %vm1395, 0.0
    %1407 = vst.msk [vmem:[#allocation2 + $0x60] sm:$0xff] %vm1393, 0.0
    %1408 = vst.msk [vmem:[#allocation2 + $0x68] sm:$0x3] %vm1395, 0.0
    %1409 = vst.msk [vmem:[#allocation2 + $0x70] sm:$0xff] %vm1393, 0.0
    %1410 = vst.msk [vmem:[#allocation2 + $0x78] sm:$0x3] %vm1395, 0.0
    %1411 = vst.msk [vmem:[#allocation2 + $0x80] sm:$0xff] %vm1393, 0.0
    %1412 = vst.msk [vmem:[#allocation2 + $0x88] sm:$0x3] %vm1395, 0.0
    %1413 = vst.msk [vmem:[#allocation2 + $0x90] sm:$0xff] %vm1393, 0.0
    %1414 = vst.msk [vmem:[#allocation2 + $0x98] sm:$0x3] %vm1395, 0.0
    %1415 = vst.msk [vmem:[#allocation2 + $0xa0] sm:$0xff] %vm1393, 0.0
    %1416 = vst.msk [vmem:[#allocation2 + $0xa8] sm:$0x3] %vm1395, 0.0
    %1417 = vst.msk [vmem:[#allocation2 + $0xb0] sm:$0xff] %vm1393, 0.0
    %1418 = vst.msk [vmem:[#allocation2 + $0xb8] sm:$0x3] %vm1395, 0.0
    %1419 = vst.msk [vmem:[#allocation2 + $0xc0] sm:$0xff] %vm1393, 0.0
    %1420 = vst.msk [vmem:[#allocation2 + $0xc8] sm:$0x3] %vm1395, 0.0
    %1421 = vst.msk [vmem:[#allocation2 + $0xd0] sm:$0xff] %vm1393, 0.0
    %1422 = vst.msk [vmem:[#allocation2 + $0xd8] sm:$0x3] %vm1395, 0.0
    %1423 = vst.msk [vmem:[#allocation2 + $0xe0] sm:$0xff] %vm1393, 0.0
    %1424 = vst.msk [vmem:[#allocation2 + $0xe8] sm:$0x3] %vm1395, 0.0
    %1425 = vst.msk [vmem:[#allocation2 + $0xf0] sm:$0xff] %vm1393, 0.0
    %1426 = vst.msk [vmem:[#allocation2 + $0xf8] sm:$0x3] %vm1395, 0.0
    %1427 = vst.msk [vmem:[#allocation2 + $0x100] sm:$0xff] %vm1393, 0.0
    %1428 = vst.msk [vmem:[#allocation2 + $0x108] sm:$0x3] %vm1395, 0.0
    %1429 = vst.msk [vmem:[#allocation2 + $0x110] sm:$0xff] %vm1393, 0.0
    %1430 = vst.msk [vmem:[#allocation2 + $0x118] sm:$0x3] %vm1395, 0.0
    %1431 = vst.msk [vmem:[#allocation2 + $0x120] sm:$0xff] %vm1393, 0.0
    %1432 = vst.msk [vmem:[#allocation2 + $0x128] sm:$0x3] %vm1395, 0.0
    %1433 = vst.msk [vmem:[#allocation2 + $0x130] sm:$0xff] %vm1393, 0.0
    %1434 = vst.msk [vmem:[#allocation2 + $0x138] sm:$0x3] %vm1395, 0.0
    %s1435 = scalar_lea.vmem [#allocation2], 16
    %1436 = vst.msk [vmem:[%s1435 + $0x1] sm:$0xff] %vm1393, %v1377
    %1437 = vst.msk [vmem:[%s1435 + $0x11] sm:$0xff] %vm1393, %v1378
    %1438 = vst.msk [vmem:[%s1435 + $0x21] sm:$0xff] %vm1393, %v1379
    %1439 = vst.msk [vmem:[%s1435 + $0x31] sm:$0xff] %vm1393, %v1380
    %1440 = vst.msk [vmem:[%s1435 + $0x41] sm:$0xff] %vm1393, %v1381
    %1441 = vst.msk [vmem:[%s1435 + $0x51] sm:$0xff] %vm1393, %v1382
    %1442 = vst.msk [vmem:[%s1435 + $0x61] sm:$0xff] %vm1393, %v1383
    %1443 = vst.msk [vmem:[%s1435 + $0x71] sm:$0xff] %vm1393, %v1384
    %1444 = vst.msk [vmem:[%s1435 + $0xa1] sm:$0xff] %vm1393, %v1385
    %1445 = vst.msk [vmem:[%s1435 + $0xb1] sm:$0xff] %vm1393, %v1386
    %1446 = vst.msk [vmem:[%s1435 + $0xc1] sm:$0xff] %vm1393, %v1387
    %1447 = vst.msk [vmem:[%s1435 + $0xd1] sm:$0xff] %vm1393, %v1388
    %1448 = vst.msk [vmem:[%s1435 + $0xe1] sm:$0xff] %vm1393, %v1389
    %1449 = vst.msk [vmem:[%s1435 + $0xf1] sm:$0xff] %vm1393, %v1390
    %1450 = vst.msk [vmem:[%s1435 + $0x101] sm:$0xff] %vm1393, %v1391
    %1451 = vst.msk [vmem:[%s1435 + $0x111] sm:$0xff] %vm1393, %v1392
    %v1452 = vld [vmem:[#allocation2] sm:$0xff]
    %v1453 = vld [vmem:[#allocation2 + $0x10] sm:$0xff]
    %v1454 = vld [vmem:[#allocation2 + $0x20] sm:$0xff]
    %v1455 = vld [vmem:[#allocation2 + $0x30] sm:$0xff]
    %v1456 = vld [vmem:[#allocation2 + $0x40] sm:$0xff]
    %v1457 = vld [vmem:[#allocation2 + $0x50] sm:$0xff]
    %v1458 = vld [vmem:[#allocation2 + $0x60] sm:$0xff]
    %v1459 = vld [vmem:[#allocation2 + $0x70] sm:$0xff]
    %v1460 = vld [vmem:[#allocation2 + $0xa0] sm:$0xff]
    %v1461 = vld [vmem:[#allocation2 + $0xb0] sm:$0xff]
    %v1462 = vld [vmem:[#allocation2 + $0xc0] sm:$0xff]
    %v1463 = vld [vmem:[#allocation2 + $0xd0] sm:$0xff]
    %v1464 = vld [vmem:[#allocation2 + $0xe0] sm:$0xff]
    %v1465 = vld [vmem:[#allocation2 + $0xf0] sm:$0xff]
    %v1466 = vld [vmem:[#allocation2 + $0x100] sm:$0xff]
    %v1467 = vld [vmem:[#allocation2 + $0x110] sm:$0xff]
    %v1468 = vld [vmem:[#allocation4] sm:$0xff]
    %v1469 = vld [vmem:[#allocation4 + $0x8] sm:$0xff]
    %v1470 = vld [vmem:[#allocation4 + $0x10] sm:$0xff]
    %v1471 = vld [vmem:[#allocation4 + $0x18] sm:$0xff]
    %v1472 = vld [vmem:[#allocation4 + $0x20] sm:$0xff]
    %v1473 = vld [vmem:[#allocation4 + $0x28] sm:$0xff]
    %v1474 = vld [vmem:[#allocation4 + $0x30] sm:$0xff]
    %v1475 = vld [vmem:[#allocation4 + $0x38] sm:$0xff]
    %v1476 = vld [vmem:[#allocation2 + $0x1] sm:$0xff]
    %v1477 = vld [vmem:[#allocation2 + $0x11] sm:$0xff]
    %v1478 = vld [vmem:[#allocation2 + $0x21] sm:$0xff]
    %v1479 = vld [vmem:[#allocation2 + $0x31] sm:$0xff]
    %v1480 = vld [vmem:[#allocation2 + $0x41] sm:$0xff]
    %v1481 = vld [vmem:[#allocation2 + $0x51] sm:$0xff]
    %v1482 = vld [vmem:[#allocation2 + $0x61] sm:$0xff]
    %v1483 = vld [vmem:[#allocation2 + $0x71] sm:$0xff]
    %v1484 = vld [vmem:[#allocation2 + $0xa1] sm:$0xff]
    %v1485 = vld [vmem:[#allocation2 + $0xb1] sm:$0xff]
    %v1486 = vld [vmem:[#allocation2 + $0xc1] sm:$0xff]
    %v1487 = vld [vmem:[#allocation2 + $0xd1] sm:$0xff]
    %v1488 = vld [vmem:[#allocation2 + $0xe1] sm:$0xff]
    %v1489 = vld [vmem:[#allocation2 + $0xf1] sm:$0xff]
    %v1490 = vld [vmem:[#allocation2 + $0x101] sm:$0xff]
    %v1491 = vld [vmem:[#allocation2 + $0x111] sm:$0xff]
    %s1492 = scalar_lea.vmem [#allocation4], 64
    %v1493 = vld [vmem:[%s1492] sm:$0xff]
    %v1494 = vld [vmem:[%s1492 + $0x8] sm:$0xff]
    %v1495 = vld [vmem:[%s1492 + $0x10] sm:$0xff]
    %v1496 = vld [vmem:[%s1492 + $0x18] sm:$0xff]
    %v1497 = vld [vmem:[%s1492 + $0x20] sm:$0xff]
    %v1498 = vld [vmem:[%s1492 + $0x28] sm:$0xff]
    %v1499 = vld [vmem:[%s1492 + $0x30] sm:$0xff]
    %v1500 = vld [vmem:[%s1492 + $0x38] sm:$0xff]
    %v1502 = vsel %vm1393, %v1476, 0
    %v1505 = vsel %vm1393, %v1477, 0
    %v1508 = vsel %vm1393, %v1478, 0
    %v1511 = vsel %vm1393, %v1479, 0
    %v1514 = vsel %vm1393, %v1480, 0
    %v1517 = vsel %vm1393, %v1481, 0
    %v1520 = vsel %vm1393, %v1482, 0
    %v1523 = vsel %vm1393, %v1483, 0
    %v1526 = vsel %vm1393, %v1484, 0
    %v1529 = vsel %vm1393, %v1485, 0
    %v1532 = vsel %vm1393, %v1486, 0
    %v1535 = vsel %vm1393, %v1487, 0
    %v1538 = vsel %vm1393, %v1488, 0
    %v1541 = vsel %vm1393, %v1489, 0
    %v1544 = vsel %vm1393, %v1490, 0
    %v1547 = vsel %vm1393, %v1491, 0
    %1549 = vmatpush.msra.mxu0 0.0
    %1550 = vmatpush.msra.mxu0 0.0
    %1551 = vmatpush.msra.mxu0 0.0
    %1552 = vmatpush.msra.mxu0 0.0
    %1553 = vmatpush.msra.mxu0 0.0
    %1554 = vmatpush.msra.mxu0 0.0
    %1555 = vmatpush.msra.mxu0 0.0
    %1556 = vmatpush.msra.mxu0 0.0
    %1557 = vmatpush.msra.mxu0 %v1500
    %1558 = vmatpush.msra.mxu0 %v1499
    %1559 = vmatpush.msra.mxu0 %v1498
    %1560 = vmatpush.msra.mxu0 %v1497
    %1561 = vmatpush.msra.mxu0 %v1496
    %1562 = vmatpush.msra.mxu0 %v1495
    %1563 = vmatpush.msra.mxu0 %v1494
    %1564 = vmatpush.msra.mxu0 %v1493
    %1565 = vmatmul.f32.gmra.mxu0 %v1502
    %v1566 = vpop.f32.mrf.mxu0
    %v1567 = vadd.f32 0.0, %v1566
    %1568 = vmatmul.f32.gmra.mxu0 %v1505
    %v1569 = vpop.f32.mrf.mxu0
    %v1570 = vadd.f32 0.0, %v1569
    %1571 = vmatmul.f32.gmra.mxu0 %v1508
    %v1572 = vpop.f32.mrf.mxu0
    %v1573 = vadd.f32 0.0, %v1572
    %1574 = vmatmul.f32.gmra.mxu0 %v1511
    %v1575 = vpop.f32.mrf.mxu0
    %v1576 = vadd.f32 0.0, %v1575
    %1577 = vmatmul.f32.gmra.mxu0 %v1514
    %v1578 = vpop.f32.mrf.mxu0
    %v1579 = vadd.f32 0.0, %v1578
    %1580 = vmatmul.f32.gmra.mxu0 %v1517
    %v1581 = vpop.f32.mrf.mxu0
    %v1582 = vadd.f32 0.0, %v1581
    %1583 = vmatmul.f32.gmra.mxu0 %v1520
    %v1584 = vpop.f32.mrf.mxu0
    %v1585 = vadd.f32 0.0, %v1584
    %1586 = vmatmul.f32.gmra.mxu0 %v1523
    %v1587 = vpop.f32.mrf.mxu0
    %v1588 = vadd.f32 0.0, %v1587
    %1589 = vmatmul.f32.gmra.mxu0 %v1526
    %v1590 = vpop.f32.mrf.mxu0
    %v1591 = vadd.f32 0.0, %v1590
    %1592 = vmatmul.f32.gmra.mxu0 %v1529
    %v1593 = vpop.f32.mrf.mxu0
    %v1594 = vadd.f32 0.0, %v1593
    %1595 = vmatmul.f32.gmra.mxu0 %v1532
    %v1596 = vpop.f32.mrf.mxu0
    %v1597 = vadd.f32 0.0, %v1596
    %1598 = vmatmul.f32.gmra.mxu0 %v1535
    %v1599 = vpop.f32.mrf.mxu0
    %v1600 = vadd.f32 0.0, %v1599
    %1601 = vmatmul.f32.gmra.mxu0 %v1538
    %v1602 = vpop.f32.mrf.mxu0
    %v1603 = vadd.f32 0.0, %v1602
    %1604 = vmatmul.f32.gmra.mxu0 %v1541
    %v1605 = vpop.f32.mrf.mxu0
    %v1606 = vadd.f32 0.0, %v1605
    %1607 = vmatmul.f32.gmra.mxu0 %v1544
    %v1608 = vpop.f32.mrf.mxu0
    %v1609 = vadd.f32 0.0, %v1608
    %1610 = vmatmul.f32.gmra.mxu0 %v1547
    %v1611 = vpop.f32.mrf.mxu0
    %v1612 = vadd.f32 0.0, %v1611
    %1613 = vdwg.mxu0
    %v1615 = vsel %vm1393, %v1452, 0
    %v1618 = vsel %vm1393, %v1453, 0
    %v1621 = vsel %vm1393, %v1454, 0
    %v1624 = vsel %vm1393, %v1455, 0
    %v1627 = vsel %vm1393, %v1456, 0
    %v1630 = vsel %vm1393, %v1457, 0
    %v1633 = vsel %vm1393, %v1458, 0
    %v1636 = vsel %vm1393, %v1459, 0
    %v1639 = vsel %vm1393, %v1460, 0
    %v1642 = vsel %vm1393, %v1461, 0
    %v1645 = vsel %vm1393, %v1462, 0
    %v1648 = vsel %vm1393, %v1463, 0
    %v1651 = vsel %vm1393, %v1464, 0
    %v1654 = vsel %vm1393, %v1465, 0
    %v1657 = vsel %vm1393, %v1466, 0
    %v1660 = vsel %vm1393, %v1467, 0
    %1662 = vmatpush.msra.mxu0 0.0
    %1663 = vmatpush.msra.mxu0 0.0
    %1664 = vmatpush.msra.mxu0 0.0
    %1665 = vmatpush.msra.mxu0 0.0
    %1666 = vmatpush.msra.mxu0 0.0
    %1667 = vmatpush.msra.mxu0 0.0
    %1668 = vmatpush.msra.mxu0 0.0
    %1669 = vmatpush.msra.mxu0 0.0
    %1670 = vmatpush.msra.mxu0 %v1475
    %1671 = vmatpush.msra.mxu0 %v1474
    %1672 = vmatpush.msra.mxu0 %v1473
    %1673 = vmatpush.msra.mxu0 %v1472
    %1674 = vmatpush.msra.mxu0 %v1471
    %1675 = vmatpush.msra.mxu0 %v1470
    %1676 = vmatpush.msra.mxu0 %v1469
    %1677 = vmatpush.msra.mxu0 %v1468
    %1678 = vmatmul.f32.gmra.mxu0 %v1615
    %v1679 = vpop.f32.mrf.mxu0
    %v1680 = vadd.f32 %v1567, %v1679
    %1681 = vmatmul.f32.gmra.mxu0 %v1618
    %v1682 = vpop.f32.mrf.mxu0
    %v1683 = vadd.f32 %v1570, %v1682
    %1684 = vmatmul.f32.gmra.mxu0 %v1621
    %v1685 = vpop.f32.mrf.mxu0
    %v1686 = vadd.f32 %v1573, %v1685
    %1687 = vmatmul.f32.gmra.mxu0 %v1624
    %v1688 = vpop.f32.mrf.mxu0
    %v1689 = vadd.f32 %v1576, %v1688
    %1690 = vmatmul.f32.gmra.mxu0 %v1627
    %v1691 = vpop.f32.mrf.mxu0
    %v1692 = vadd.f32 %v1579, %v1691
    %1693 = vmatmul.f32.gmra.mxu0 %v1630
    %v1694 = vpop.f32.mrf.mxu0
    %v1695 = vadd.f32 %v1582, %v1694
    %1696 = vmatmul.f32.gmra.mxu0 %v1633
    %v1697 = vpop.f32.mrf.mxu0
    %v1698 = vadd.f32 %v1585, %v1697
    %1699 = vmatmul.f32.gmra.mxu0 %v1636
    %v1700 = vpop.f32.mrf.mxu0
    %v1701 = vadd.f32 %v1588, %v1700
    %1702 = vmatmul.f32.gmra.mxu0 %v1639
    %v1703 = vpop.f32.mrf.mxu0
    %v1704 = vadd.f32 %v1591, %v1703
    %1705 = vmatmul.f32.gmra.mxu0 %v1642
    %v1706 = vpop.f32.mrf.mxu0
    %v1707 = vadd.f32 %v1594, %v1706
    %1708 = vmatmul.f32.gmra.mxu0 %v1645
    %v1709 = vpop.f32.mrf.mxu0
    %v1710 = vadd.f32 %v1597, %v1709
    %1711 = vmatmul.f32.gmra.mxu0 %v1648
    %v1712 = vpop.f32.mrf.mxu0
    %v1713 = vadd.f32 %v1600, %v1712
    %1714 = vmatmul.f32.gmra.mxu0 %v1651
    %v1715 = vpop.f32.mrf.mxu0
    %v1716 = vadd.f32 %v1603, %v1715
    %1717 = vmatmul.f32.gmra.mxu0 %v1654
    %v1718 = vpop.f32.mrf.mxu0
    %v1719 = vadd.f32 %v1606, %v1718
    %1720 = vmatmul.f32.gmra.mxu0 %v1657
    %v1721 = vpop.f32.mrf.mxu0
    %v1722 = vadd.f32 %v1609, %v1721
    %1723 = vmatmul.f32.gmra.mxu0 %v1660
    %v1724 = vpop.f32.mrf.mxu0
    %v1725 = vadd.f32 %v1612, %v1724
    %1726 = vdwg.mxu0
    %v1727 = vld [vmem:[#allocation2 + $0x2] sm:$0xff]
    %v1728 = vld [vmem:[#allocation2 + $0x12] sm:$0xff]
    %v1729 = vld [vmem:[#allocation2 + $0x22] sm:$0xff]
    %v1730 = vld [vmem:[#allocation2 + $0x32] sm:$0xff]
    %v1731 = vld [vmem:[#allocation2 + $0x42] sm:$0xff]
    %v1732 = vld [vmem:[#allocation2 + $0x52] sm:$0xff]
    %v1733 = vld [vmem:[#allocation2 + $0x62] sm:$0xff]
    %v1734 = vld [vmem:[#allocation2 + $0x72] sm:$0xff]
    %v1735 = vld [vmem:[#allocation2 + $0xa2] sm:$0xff]
    %v1736 = vld [vmem:[#allocation2 + $0xb2] sm:$0xff]
    %v1737 = vld [vmem:[#allocation2 + $0xc2] sm:$0xff]
    %v1738 = vld [vmem:[#allocation2 + $0xd2] sm:$0xff]
    %v1739 = vld [vmem:[#allocation2 + $0xe2] sm:$0xff]
    %v1740 = vld [vmem:[#allocation2 + $0xf2] sm:$0xff]
    %v1741 = vld [vmem:[#allocation2 + $0x102] sm:$0xff]
    %v1742 = vld [vmem:[#allocation2 + $0x112] sm:$0xff]
    %s1743 = scalar_lea.vmem [#allocation4], 128
    %v1744 = vld [vmem:[%s1743] sm:$0xff]
    %v1745 = vld [vmem:[%s1743 + $0x8] sm:$0xff]
    %v1746 = vld [vmem:[%s1743 + $0x10] sm:$0xff]
    %v1747 = vld [vmem:[%s1743 + $0x18] sm:$0xff]
    %v1748 = vld [vmem:[%s1743 + $0x20] sm:$0xff]
    %v1749 = vld [vmem:[%s1743 + $0x28] sm:$0xff]
    %v1750 = vld [vmem:[%s1743 + $0x30] sm:$0xff]
    %v1751 = vld [vmem:[%s1743 + $0x38] sm:$0xff]
    %v1753 = vsel %vm1393, %v1727, 0
    %v1756 = vsel %vm1393, %v1728, 0
    %v1759 = vsel %vm1393, %v1729, 0
    %v1762 = vsel %vm1393, %v1730, 0
    %v1765 = vsel %vm1393, %v1731, 0
    %v1768 = vsel %vm1393, %v1732, 0
    %v1771 = vsel %vm1393, %v1733, 0
    %v1774 = vsel %vm1393, %v1734, 0
    %v1777 = vsel %vm1393, %v1735, 0
    %v1780 = vsel %vm1393, %v1736, 0
    %v1783 = vsel %vm1393, %v1737, 0
    %v1786 = vsel %vm1393, %v1738, 0
    %v1789 = vsel %vm1393, %v1739, 0
    %v1792 = vsel %vm1393, %v1740, 0
    %v1795 = vsel %vm1393, %v1741, 0
    %v1798 = vsel %vm1393, %v1742, 0
    %1800 = vmatpush.msra.mxu0 0.0
    %1801 = vmatpush.msra.mxu0 0.0
    %1802 = vmatpush.msra.mxu0 0.0
    %1803 = vmatpush.msra.mxu0 0.0
    %1804 = vmatpush.msra.mxu0 0.0
    %1805 = vmatpush.msra.mxu0 0.0
    %1806 = vmatpush.msra.mxu0 0.0
    %1807 = vmatpush.msra.mxu0 0.0
    %1808 = vmatpush.msra.mxu0 %v1751
    %1809 = vmatpush.msra.mxu0 %v1750
    %1810 = vmatpush.msra.mxu0 %v1749
    %1811 = vmatpush.msra.mxu0 %v1748
    %1812 = vmatpush.msra.mxu0 %v1747
    %1813 = vmatpush.msra.mxu0 %v1746
    %1814 = vmatpush.msra.mxu0 %v1745
    %1815 = vmatpush.msra.mxu0 %v1744
    %1816 = vmatmul.f32.gmra.mxu0 %v1753
    %v1817 = vpop.f32.mrf.mxu0
    %v1818 = vadd.f32 0.0, %v1817
    %1819 = vmatmul.f32.gmra.mxu0 %v1756
    %v1820 = vpop.f32.mrf.mxu0
    %v1821 = vadd.f32 0.0, %v1820
    %1822 = vmatmul.f32.gmra.mxu0 %v1759
    %v1823 = vpop.f32.mrf.mxu0
    %v1824 = vadd.f32 0.0, %v1823
    %1825 = vmatmul.f32.gmra.mxu0 %v1762
    %v1826 = vpop.f32.mrf.mxu0
    %v1827 = vadd.f32 0.0, %v1826
    %1828 = vmatmul.f32.gmra.mxu0 %v1765
    %v1829 = vpop.f32.mrf.mxu0
    %v1830 = vadd.f32 0.0, %v1829
    %1831 = vmatmul.f32.gmra.mxu0 %v1768
    %v1832 = vpop.f32.mrf.mxu0
    %v1833 = vadd.f32 0.0, %v1832
    %1834 = vmatmul.f32.gmra.mxu0 %v1771
    %v1835 = vpop.f32.mrf.mxu0
    %v1836 = vadd.f32 0.0, %v1835
    %1837 = vmatmul.f32.gmra.mxu0 %v1774
    %v1838 = vpop.f32.mrf.mxu0
    %v1839 = vadd.f32 0.0, %v1838
    %1840 = vmatmul.f32.gmra.mxu0 %v1777
    %v1841 = vpop.f32.mrf.mxu0
    %v1842 = vadd.f32 0.0, %v1841
    %1843 = vmatmul.f32.gmra.mxu0 %v1780
    %v1844 = vpop.f32.mrf.mxu0
    %v1845 = vadd.f32 0.0, %v1844
    %1846 = vmatmul.f32.gmra.mxu0 %v1783
    %v1847 = vpop.f32.mrf.mxu0
    %v1848 = vadd.f32 0.0, %v1847
    %1849 = vmatmul.f32.gmra.mxu0 %v1786
    %v1850 = vpop.f32.mrf.mxu0
    %v1851 = vadd.f32 0.0, %v1850
    %1852 = vmatmul.f32.gmra.mxu0 %v1789
    %v1853 = vpop.f32.mrf.mxu0
    %v1854 = vadd.f32 0.0, %v1853
    %1855 = vmatmul.f32.gmra.mxu0 %v1792
    %v1856 = vpop.f32.mrf.mxu0
    %v1857 = vadd.f32 0.0, %v1856
    %1858 = vmatmul.f32.gmra.mxu0 %v1795
    %v1859 = vpop.f32.mrf.mxu0
    %v1860 = vadd.f32 0.0, %v1859
    %1861 = vmatmul.f32.gmra.mxu0 %v1798
    %v1862 = vpop.f32.mrf.mxu0
    %v1863 = vadd.f32 0.0, %v1862
    %1864 = vdwg.mxu0
    %v1865 = vadd.f32 %v1680, %v1818
    %v1866 = vadd.f32 %v1683, %v1821
    %v1867 = vadd.f32 %v1686, %v1824
    %v1868 = vadd.f32 %v1689, %v1827
    %v1869 = vadd.f32 %v1692, %v1830
    %v1870 = vadd.f32 %v1695, %v1833
    %v1871 = vadd.f32 %v1698, %v1836
    %v1872 = vadd.f32 %v1701, %v1839
    %v1873 = vadd.f32 %v1704, %v1842
    %v1874 = vadd.f32 %v1707, %v1845
    %v1875 = vadd.f32 %v1710, %v1848
    %v1876 = vadd.f32 %v1713, %v1851
    %v1877 = vadd.f32 %v1716, %v1854
    %v1878 = vadd.f32 %v1719, %v1857
    %v1879 = vadd.f32 %v1722, %v1860
    %v1880 = vadd.f32 %v1725, %v1863
    %v1881 = vld [vmem:[%s1435] sm:$0xff]
    %v1882 = vld [vmem:[%s1435 + $0x10] sm:$0xff]
    %v1883 = vld [vmem:[%s1435 + $0x20] sm:$0xff]
    %v1884 = vld [vmem:[%s1435 + $0x30] sm:$0xff]
    %v1885 = vld [vmem:[%s1435 + $0x40] sm:$0xff]
    %v1886 = vld [vmem:[%s1435 + $0x50] sm:$0xff]
    %v1887 = vld [vmem:[%s1435 + $0x60] sm:$0xff]
    %v1888 = vld [vmem:[%s1435 + $0x70] sm:$0xff]
    %v1889 = vld [vmem:[%s1435 + $0xa0] sm:$0xff]
    %v1890 = vld [vmem:[%s1435 + $0xb0] sm:$0xff]
    %v1891 = vld [vmem:[%s1435 + $0xc0] sm:$0xff]
    %v1892 = vld [vmem:[%s1435 + $0xd0] sm:$0xff]
    %v1893 = vld [vmem:[%s1435 + $0xe0] sm:$0xff]
    %v1894 = vld [vmem:[%s1435 + $0xf0] sm:$0xff]
    %v1895 = vld [vmem:[%s1435 + $0x100] sm:$0xff]
    %v1896 = vld [vmem:[%s1435 + $0x110] sm:$0xff]
    %s1897 = scalar_lea.vmem [#allocation4], 192
    %v1898 = vld [vmem:[%s1897] sm:$0xff]
    %v1899 = vld [vmem:[%s1897 + $0x8] sm:$0xff]
    %v1900 = vld [vmem:[%s1897 + $0x10] sm:$0xff]
    %v1901 = vld [vmem:[%s1897 + $0x18] sm:$0xff]
    %v1902 = vld [vmem:[%s1897 + $0x20] sm:$0xff]
    %v1903 = vld [vmem:[%s1897 + $0x28] sm:$0xff]
    %v1904 = vld [vmem:[%s1897 + $0x30] sm:$0xff]
    %v1905 = vld [vmem:[%s1897 + $0x38] sm:$0xff]
    %v1907 = vsel %vm1393, %v1881, 0
    %v1910 = vsel %vm1393, %v1882, 0
    %v1913 = vsel %vm1393, %v1883, 0
    %v1916 = vsel %vm1393, %v1884, 0
    %v1919 = vsel %vm1393, %v1885, 0
    %v1922 = vsel %vm1393, %v1886, 0
    %v1925 = vsel %vm1393, %v1887, 0
    %v1928 = vsel %vm1393, %v1888, 0
    %v1931 = vsel %vm1393, %v1889, 0
    %v1934 = vsel %vm1393, %v1890, 0
    %v1937 = vsel %vm1393, %v1891, 0
    %v1940 = vsel %vm1393, %v1892, 0
    %v1943 = vsel %vm1393, %v1893, 0
    %v1946 = vsel %vm1393, %v1894, 0
    %v1949 = vsel %vm1393, %v1895, 0
    %v1952 = vsel %vm1393, %v1896, 0
    %1954 = vmatpush.msra.mxu0 0.0
    %1955 = vmatpush.msra.mxu0 0.0
    %1956 = vmatpush.msra.mxu0 0.0
    %1957 = vmatpush.msra.mxu0 0.0
    %1958 = vmatpush.msra.mxu0 0.0
    %1959 = vmatpush.msra.mxu0 0.0
    %1960 = vmatpush.msra.mxu0 0.0
    %1961 = vmatpush.msra.mxu0 0.0
    %1962 = vmatpush.msra.mxu0 %v1905
    %1963 = vmatpush.msra.mxu0 %v1904
    %1964 = vmatpush.msra.mxu0 %v1903
    %1965 = vmatpush.msra.mxu0 %v1902
    %1966 = vmatpush.msra.mxu0 %v1901
    %1967 = vmatpush.msra.mxu0 %v1900
    %1968 = vmatpush.msra.mxu0 %v1899
    %1969 = vmatpush.msra.mxu0 %v1898
    %1970 = vmatmul.f32.gmra.mxu0 %v1907
    %v1971 = vpop.f32.mrf.mxu0
    %v1972 = vadd.f32 0.0, %v1971
    %1973 = vmatmul.f32.gmra.mxu0 %v1910
    %v1974 = vpop.f32.mrf.mxu0
    %v1975 = vadd.f32 0.0, %v1974
    %1976 = vmatmul.f32.gmra.mxu0 %v1913
    %v1977 = vpop.f32.mrf.mxu0
    %v1978 = vadd.f32 0.0, %v1977
    %1979 = vmatmul.f32.gmra.mxu0 %v1916
    %v1980 = vpop.f32.mrf.mxu0
    %v1981 = vadd.f32 0.0, %v1980
    %1982 = vmatmul.f32.gmra.mxu0 %v1919
    %v1983 = vpop.f32.mrf.mxu0
    %v1984 = vadd.f32 0.0, %v1983
    %1985 = vmatmul.f32.gmra.mxu0 %v1922
    %v1986 = vpop.f32.mrf.mxu0
    %v1987 = vadd.f32 0.0, %v1986
    %1988 = vmatmul.f32.gmra.mxu0 %v1925
    %v1989 = vpop.f32.mrf.mxu0
    %v1990 = vadd.f32 0.0, %v1989
    %1991 = vmatmul.f32.gmra.mxu0 %v1928
    %v1992 = vpop.f32.mrf.mxu0
    %v1993 = vadd.f32 0.0, %v1992
    %1994 = vmatmul.f32.gmra.mxu0 %v1931
    %v1995 = vpop.f32.mrf.mxu0
    %v1996 = vadd.f32 0.0, %v1995
    %1997 = vmatmul.f32.gmra.mxu0 %v1934
    %v1998 = vpop.f32.mrf.mxu0
    %v1999 = vadd.f32 0.0, %v1998
    %2000 = vmatmul.f32.gmra.mxu0 %v1937
    %v2001 = vpop.f32.mrf.mxu0
    %v2002 = vadd.f32 0.0, %v2001
    %2003 = vmatmul.f32.gmra.mxu0 %v1940
    %v2004 = vpop.f32.mrf.mxu0
    %v2005 = vadd.f32 0.0, %v2004
    %2006 = vmatmul.f32.gmra.mxu0 %v1943
    %v2007 = vpop.f32.mrf.mxu0
    %v2008 = vadd.f32 0.0, %v2007
    %2009 = vmatmul.f32.gmra.mxu0 %v1946
    %v2010 = vpop.f32.mrf.mxu0
    %v2011 = vadd.f32 0.0, %v2010
    %2012 = vmatmul.f32.gmra.mxu0 %v1949
    %v2013 = vpop.f32.mrf.mxu0
    %v2014 = vadd.f32 0.0, %v2013
    %2015 = vmatmul.f32.gmra.mxu0 %v1952
    %v2016 = vpop.f32.mrf.mxu0
    %v2017 = vadd.f32 0.0, %v2016
    %2018 = vdwg.mxu0
    %v2019 = vadd.f32 %v1865, %v1972
    %v2020 = vadd.f32 %v1866, %v1975
    %v2021 = vadd.f32 %v1867, %v1978
    %v2022 = vadd.f32 %v1868, %v1981
    %v2023 = vadd.f32 %v1869, %v1984
    %v2024 = vadd.f32 %v1870, %v1987
    %v2025 = vadd.f32 %v1871, %v1990
    %v2026 = vadd.f32 %v1872, %v1993
    %v2027 = vadd.f32 %v1873, %v1996
    %v2028 = vadd.f32 %v1874, %v1999
    %v2029 = vadd.f32 %v1875, %v2002
    %v2030 = vadd.f32 %v1876, %v2005
    %v2031 = vadd.f32 %v1877, %v2008
    %v2032 = vadd.f32 %v1878, %v2011
    %v2033 = vadd.f32 %v1879, %v2014
    %v2034 = vadd.f32 %v1880, %v2017
    %v2035 = vld [vmem:[%s1435 + $0x1] sm:$0xff]
    %v2036 = vld [vmem:[%s1435 + $0x11] sm:$0xff]
    %v2037 = vld [vmem:[%s1435 + $0x21] sm:$0xff]
    %v2038 = vld [vmem:[%s1435 + $0x31] sm:$0xff]
    %v2039 = vld [vmem:[%s1435 + $0x41] sm:$0xff]
    %v2040 = vld [vmem:[%s1435 + $0x51] sm:$0xff]
    %v2041 = vld [vmem:[%s1435 + $0x61] sm:$0xff]
    %v2042 = vld [vmem:[%s1435 + $0x71] sm:$0xff]
    %v2043 = vld [vmem:[%s1435 + $0xa1] sm:$0xff]
    %v2044 = vld [vmem:[%s1435 + $0xb1] sm:$0xff]
    %v2045 = vld [vmem:[%s1435 + $0xc1] sm:$0xff]
    %v2046 = vld [vmem:[%s1435 + $0xd1] sm:$0xff]
    %v2047 = vld [vmem:[%s1435 + $0xe1] sm:$0xff]
    %v2048 = vld [vmem:[%s1435 + $0xf1] sm:$0xff]
    %v2049 = vld [vmem:[%s1435 + $0x101] sm:$0xff]
    %v2050 = vld [vmem:[%s1435 + $0x111] sm:$0xff]
    %s2051 = scalar_lea.vmem [#allocation4], 256
    %v2052 = vld [vmem:[%s2051] sm:$0xff]
    %v2053 = vld [vmem:[%s2051 + $0x8] sm:$0xff]
    %v2054 = vld [vmem:[%s2051 + $0x10] sm:$0xff]
    %v2055 = vld [vmem:[%s2051 + $0x18] sm:$0xff]
    %v2056 = vld [vmem:[%s2051 + $0x20] sm:$0xff]
    %v2057 = vld [vmem:[%s2051 + $0x28] sm:$0xff]
    %v2058 = vld [vmem:[%s2051 + $0x30] sm:$0xff]
    %v2059 = vld [vmem:[%s2051 + $0x38] sm:$0xff]
    %v2061 = vsel %vm1393, %v2035, 0
    %v2064 = vsel %vm1393, %v2036, 0
    %v2067 = vsel %vm1393, %v2037, 0
    %v2070 = vsel %vm1393, %v2038, 0
    %v2073 = vsel %vm1393, %v2039, 0
    %v2076 = vsel %vm1393, %v2040, 0
    %v2079 = vsel %vm1393, %v2041, 0
    %v2082 = vsel %vm1393, %v2042, 0
    %v2085 = vsel %vm1393, %v2043, 0
    %v2088 = vsel %vm1393, %v2044, 0
    %v2091 = vsel %vm1393, %v2045, 0
    %v2094 = vsel %vm1393, %v2046, 0
    %v2097 = vsel %vm1393, %v2047, 0
    %v2100 = vsel %vm1393, %v2048, 0
    %v2103 = vsel %vm1393, %v2049, 0
    %v2106 = vsel %vm1393, %v2050, 0
    %2108 = vmatpush.msra.mxu0 0.0
    %2109 = vmatpush.msra.mxu0 0.0
    %2110 = vmatpush.msra.mxu0 0.0
    %2111 = vmatpush.msra.mxu0 0.0
    %2112 = vmatpush.msra.mxu0 0.0
    %2113 = vmatpush.msra.mxu0 0.0
    %2114 = vmatpush.msra.mxu0 0.0
    %2115 = vmatpush.msra.mxu0 0.0
    %2116 = vmatpush.msra.mxu0 %v2059
    %2117 = vmatpush.msra.mxu0 %v2058
    %2118 = vmatpush.msra.mxu0 %v2057
    %2119 = vmatpush.msra.mxu0 %v2056
    %2120 = vmatpush.msra.mxu0 %v2055
    %2121 = vmatpush.msra.mxu0 %v2054
    %2122 = vmatpush.msra.mxu0 %v2053
    %2123 = vmatpush.msra.mxu0 %v2052
    %2124 = vmatmul.f32.gmra.mxu0 %v2061
    %v2125 = vpop.f32.mrf.mxu0
    %v2126 = vadd.f32 0.0, %v2125
    %2127 = vmatmul.f32.gmra.mxu0 %v2064
    %v2128 = vpop.f32.mrf.mxu0
    %v2129 = vadd.f32 0.0, %v2128
    %2130 = vmatmul.f32.gmra.mxu0 %v2067
    %v2131 = vpop.f32.mrf.mxu0
    %v2132 = vadd.f32 0.0, %v2131
    %2133 = vmatmul.f32.gmra.mxu0 %v2070
    %v2134 = vpop.f32.mrf.mxu0
    %v2135 = vadd.f32 0.0, %v2134
    %2136 = vmatmul.f32.gmra.mxu0 %v2073
    %v2137 = vpop.f32.mrf.mxu0
    %v2138 = vadd.f32 0.0, %v2137
    %2139 = vmatmul.f32.gmra.mxu0 %v2076
    %v2140 = vpop.f32.mrf.mxu0
    %v2141 = vadd.f32 0.0, %v2140
    %2142 = vmatmul.f32.gmra.mxu0 %v2079
    %v2143 = vpop.f32.mrf.mxu0
    %v2144 = vadd.f32 0.0, %v2143
    %2145 = vmatmul.f32.gmra.mxu0 %v2082
    %v2146 = vpop.f32.mrf.mxu0
    %v2147 = vadd.f32 0.0, %v2146
    %2148 = vmatmul.f32.gmra.mxu0 %v2085
    %v2149 = vpop.f32.mrf.mxu0
    %v2150 = vadd.f32 0.0, %v2149
    %2151 = vmatmul.f32.gmra.mxu0 %v2088
    %v2152 = vpop.f32.mrf.mxu0
    %v2153 = vadd.f32 0.0, %v2152
    %2154 = vmatmul.f32.gmra.mxu0 %v2091
    %v2155 = vpop.f32.mrf.mxu0
    %v2156 = vadd.f32 0.0, %v2155
    %2157 = vmatmul.f32.gmra.mxu0 %v2094
    %v2158 = vpop.f32.mrf.mxu0
    %v2159 = vadd.f32 0.0, %v2158
    %2160 = vmatmul.f32.gmra.mxu0 %v2097
    %v2161 = vpop.f32.mrf.mxu0
    %v2162 = vadd.f32 0.0, %v2161
    %2163 = vmatmul.f32.gmra.mxu0 %v2100
    %v2164 = vpop.f32.mrf.mxu0
    %v2165 = vadd.f32 0.0, %v2164
    %2166 = vmatmul.f32.gmra.mxu0 %v2103
    %v2167 = vpop.f32.mrf.mxu0
    %v2168 = vadd.f32 0.0, %v2167
    %2169 = vmatmul.f32.gmra.mxu0 %v2106
    %v2170 = vpop.f32.mrf.mxu0
    %v2171 = vadd.f32 0.0, %v2170
    %2172 = vdwg.mxu0
    %v2173 = vadd.f32 %v2019, %v2126
    %v2174 = vadd.f32 %v2020, %v2129
    %v2175 = vadd.f32 %v2021, %v2132
    %v2176 = vadd.f32 %v2022, %v2135
    %v2177 = vadd.f32 %v2023, %v2138
    %v2178 = vadd.f32 %v2024, %v2141
    %v2179 = vadd.f32 %v2025, %v2144
    %v2180 = vadd.f32 %v2026, %v2147
    %v2181 = vadd.f32 %v2027, %v2150
    %v2182 = vadd.f32 %v2028, %v2153
    %v2183 = vadd.f32 %v2029, %v2156
    %v2184 = vadd.f32 %v2030, %v2159
    %v2185 = vadd.f32 %v2031, %v2162
    %v2186 = vadd.f32 %v2032, %v2165
    %v2187 = vadd.f32 %v2033, %v2168
    %v2188 = vadd.f32 %v2034, %v2171
    %v2189 = vld [vmem:[%s1435 + $0x2] sm:$0xff]
    %v2190 = vld [vmem:[%s1435 + $0x12] sm:$0xff]
    %v2191 = vld [vmem:[%s1435 + $0x22] sm:$0xff]
    %v2192 = vld [vmem:[%s1435 + $0x32] sm:$0xff]
    %v2193 = vld [vmem:[%s1435 + $0x42] sm:$0xff]
    %v2194 = vld [vmem:[%s1435 + $0x52] sm:$0xff]
    %v2195 = vld [vmem:[%s1435 + $0x62] sm:$0xff]
    %v2196 = vld [vmem:[%s1435 + $0x72] sm:$0xff]
    %v2197 = vld [vmem:[%s1435 + $0xa2] sm:$0xff]
    %v2198 = vld [vmem:[%s1435 + $0xb2] sm:$0xff]
    %v2199 = vld [vmem:[%s1435 + $0xc2] sm:$0xff]
    %v2200 = vld [vmem:[%s1435 + $0xd2] sm:$0xff]
    %v2201 = vld [vmem:[%s1435 + $0xe2] sm:$0xff]
    %v2202 = vld [vmem:[%s1435 + $0xf2] sm:$0xff]
    %v2203 = vld [vmem:[%s1435 + $0x102] sm:$0xff]
    %v2204 = vld [vmem:[%s1435 + $0x112] sm:$0xff]
    %s2205 = scalar_lea.vmem [#allocation4], 320
    %v2206 = vld [vmem:[%s2205] sm:$0xff]
    %v2207 = vld [vmem:[%s2205 + $0x8] sm:$0xff]
    %v2208 = vld [vmem:[%s2205 + $0x10] sm:$0xff]
    %v2209 = vld [vmem:[%s2205 + $0x18] sm:$0xff]
    %v2210 = vld [vmem:[%s2205 + $0x20] sm:$0xff]
    %v2211 = vld [vmem:[%s2205 + $0x28] sm:$0xff]
    %v2212 = vld [vmem:[%s2205 + $0x30] sm:$0xff]
    %v2213 = vld [vmem:[%s2205 + $0x38] sm:$0xff]
    %v2215 = vsel %vm1393, %v2189, 0
    %v2218 = vsel %vm1393, %v2190, 0
    %v2221 = vsel %vm1393, %v2191, 0
    %v2224 = vsel %vm1393, %v2192, 0
    %v2227 = vsel %vm1393, %v2193, 0
    %v2230 = vsel %vm1393, %v2194, 0
    %v2233 = vsel %vm1393, %v2195, 0
    %v2236 = vsel %vm1393, %v2196, 0
    %v2239 = vsel %vm1393, %v2197, 0
    %v2242 = vsel %vm1393, %v2198, 0
    %v2245 = vsel %vm1393, %v2199, 0
    %v2248 = vsel %vm1393, %v2200, 0
    %v2251 = vsel %vm1393, %v2201, 0
    %v2254 = vsel %vm1393, %v2202, 0
    %v2257 = vsel %vm1393, %v2203, 0
    %v2260 = vsel %vm1393, %v2204, 0
    %2262 = vmatpush.msra.mxu0 0.0
    %2263 = vmatpush.msra.mxu0 0.0
    %2264 = vmatpush.msra.mxu0 0.0
    %2265 = vmatpush.msra.mxu0 0.0
    %2266 = vmatpush.msra.mxu0 0.0
    %2267 = vmatpush.msra.mxu0 0.0
    %2268 = vmatpush.msra.mxu0 0.0
    %2269 = vmatpush.msra.mxu0 0.0
    %2270 = vmatpush.msra.mxu0 %v2213
    %2271 = vmatpush.msra.mxu0 %v2212
    %2272 = vmatpush.msra.mxu0 %v2211
    %2273 = vmatpush.msra.mxu0 %v2210
    %2274 = vmatpush.msra.mxu0 %v2209
    %2275 = vmatpush.msra.mxu0 %v2208
    %2276 = vmatpush.msra.mxu0 %v2207
    %2277 = vmatpush.msra.mxu0 %v2206
    %2278 = vmatmul.f32.gmra.mxu0 %v2215
    %v2279 = vpop.f32.mrf.mxu0
    %v2280 = vadd.f32 0.0, %v2279
    %2281 = vmatmul.f32.gmra.mxu0 %v2218
    %v2282 = vpop.f32.mrf.mxu0
    %v2283 = vadd.f32 0.0, %v2282
    %2284 = vmatmul.f32.gmra.mxu0 %v2221
    %v2285 = vpop.f32.mrf.mxu0
    %v2286 = vadd.f32 0.0, %v2285
    %2287 = vmatmul.f32.gmra.mxu0 %v2224
    %v2288 = vpop.f32.mrf.mxu0
    %v2289 = vadd.f32 0.0, %v2288
    %2290 = vmatmul.f32.gmra.mxu0 %v2227
    %v2291 = vpop.f32.mrf.mxu0
    %v2292 = vadd.f32 0.0, %v2291
    %2293 = vmatmul.f32.gmra.mxu0 %v2230
    %v2294 = vpop.f32.mrf.mxu0
    %v2295 = vadd.f32 0.0, %v2294
    %2296 = vmatmul.f32.gmra.mxu0 %v2233
    %v2297 = vpop.f32.mrf.mxu0
    %v2298 = vadd.f32 0.0, %v2297
    %2299 = vmatmul.f32.gmra.mxu0 %v2236
    %v2300 = vpop.f32.mrf.mxu0
    %v2301 = vadd.f32 0.0, %v2300
    %2302 = vmatmul.f32.gmra.mxu0 %v2239
    %v2303 = vpop.f32.mrf.mxu0
    %v2304 = vadd.f32 0.0, %v2303
    %2305 = vmatmul.f32.gmra.mxu0 %v2242
    %v2306 = vpop.f32.mrf.mxu0
    %v2307 = vadd.f32 0.0, %v2306
    %2308 = vmatmul.f32.gmra.mxu0 %v2245
    %v2309 = vpop.f32.mrf.mxu0
    %v2310 = vadd.f32 0.0, %v2309
    %2311 = vmatmul.f32.gmra.mxu0 %v2248
    %v2312 = vpop.f32.mrf.mxu0
    %v2313 = vadd.f32 0.0, %v2312
    %2314 = vmatmul.f32.gmra.mxu0 %v2251
    %v2315 = vpop.f32.mrf.mxu0
    %v2316 = vadd.f32 0.0, %v2315
    %2317 = vmatmul.f32.gmra.mxu0 %v2254
    %v2318 = vpop.f32.mrf.mxu0
    %v2319 = vadd.f32 0.0, %v2318
    %2320 = vmatmul.f32.gmra.mxu0 %v2257
    %v2321 = vpop.f32.mrf.mxu0
    %v2322 = vadd.f32 0.0, %v2321
    %2323 = vmatmul.f32.gmra.mxu0 %v2260
    %v2324 = vpop.f32.mrf.mxu0
    %v2325 = vadd.f32 0.0, %v2324
    %2326 = vdwg.mxu0
    %v2327 = vadd.f32 %v2173, %v2280
    %v2328 = vadd.f32 %v2174, %v2283
    %v2329 = vadd.f32 %v2175, %v2286
    %v2330 = vadd.f32 %v2176, %v2289
    %v2331 = vadd.f32 %v2177, %v2292
    %v2332 = vadd.f32 %v2178, %v2295
    %v2333 = vadd.f32 %v2179, %v2298
    %v2334 = vadd.f32 %v2180, %v2301
    %v2335 = vadd.f32 %v2181, %v2304
    %v2336 = vadd.f32 %v2182, %v2307
    %v2337 = vadd.f32 %v2183, %v2310
    %v2338 = vadd.f32 %v2184, %v2313
    %v2339 = vadd.f32 %v2185, %v2316
    %v2340 = vadd.f32 %v2186, %v2319
    %v2341 = vadd.f32 %v2187, %v2322
    %v2342 = vadd.f32 %v2188, %v2325
    %s2343 = scalar_lea.vmem [#allocation2], 32
    %v2344 = vld [vmem:[%s2343] sm:$0xff]
    %v2345 = vld [vmem:[%s2343 + $0x10] sm:$0xff]
    %v2346 = vld [vmem:[%s2343 + $0x20] sm:$0xff]
    %v2347 = vld [vmem:[%s2343 + $0x30] sm:$0xff]
    %v2348 = vld [vmem:[%s2343 + $0x40] sm:$0xff]
    %v2349 = vld [vmem:[%s2343 + $0x50] sm:$0xff]
    %v2350 = vld [vmem:[%s2343 + $0x60] sm:$0xff]
    %v2351 = vld [vmem:[%s2343 + $0x70] sm:$0xff]
    %v2352 = vld [vmem:[%s2343 + $0xa0] sm:$0xff]
    %v2353 = vld [vmem:[%s2343 + $0xb0] sm:$0xff]
    %v2354 = vld [vmem:[%s2343 + $0xc0] sm:$0xff]
    %v2355 = vld [vmem:[%s2343 + $0xd0] sm:$0xff]
    %v2356 = vld [vmem:[%s2343 + $0xe0] sm:$0xff]
    %v2357 = vld [vmem:[%s2343 + $0xf0] sm:$0xff]
    %v2358 = vld [vmem:[%s2343 + $0x100] sm:$0xff]
    %v2359 = vld [vmem:[%s2343 + $0x110] sm:$0xff]
    %s2360 = scalar_lea.vmem [#allocation4], 384
    %v2361 = vld [vmem:[%s2360] sm:$0xff]
    %v2362 = vld [vmem:[%s2360 + $0x8] sm:$0xff]
    %v2363 = vld [vmem:[%s2360 + $0x10] sm:$0xff]
    %v2364 = vld [vmem:[%s2360 + $0x18] sm:$0xff]
    %v2365 = vld [vmem:[%s2360 + $0x20] sm:$0xff]
    %v2366 = vld [vmem:[%s2360 + $0x28] sm:$0xff]
    %v2367 = vld [vmem:[%s2360 + $0x30] sm:$0xff]
    %v2368 = vld [vmem:[%s2360 + $0x38] sm:$0xff]
    %v2370 = vsel %vm1393, %v2344, 0
    %v2373 = vsel %vm1393, %v2345, 0
    %v2376 = vsel %vm1393, %v2346, 0
    %v2379 = vsel %vm1393, %v2347, 0
    %v2382 = vsel %vm1393, %v2348, 0
    %v2385 = vsel %vm1393, %v2349, 0
    %v2388 = vsel %vm1393, %v2350, 0
    %v2391 = vsel %vm1393, %v2351, 0
    %v2394 = vsel %vm1393, %v2352, 0
    %v2397 = vsel %vm1393, %v2353, 0
    %v2400 = vsel %vm1393, %v2354, 0
    %v2403 = vsel %vm1393, %v2355, 0
    %v2406 = vsel %vm1393, %v2356, 0
    %v2409 = vsel %vm1393, %v2357, 0
    %v2412 = vsel %vm1393, %v2358, 0
    %v2415 = vsel %vm1393, %v2359, 0
    %2417 = vmatpush.msra.mxu0 0.0
    %2418 = vmatpush.msra.mxu0 0.0
    %2419 = vmatpush.msra.mxu0 0.0
    %2420 = vmatpush.msra.mxu0 0.0
    %2421 = vmatpush.msra.mxu0 0.0
    %2422 = vmatpush.msra.mxu0 0.0
    %2423 = vmatpush.msra.mxu0 0.0
    %2424 = vmatpush.msra.mxu0 0.0
    %2425 = vmatpush.msra.mxu0 %v2368
    %2426 = vmatpush.msra.mxu0 %v2367
    %2427 = vmatpush.msra.mxu0 %v2366
    %2428 = vmatpush.msra.mxu0 %v2365
    %2429 = vmatpush.msra.mxu0 %v2364
    %2430 = vmatpush.msra.mxu0 %v2363
    %2431 = vmatpush.msra.mxu0 %v2362
    %2432 = vmatpush.msra.mxu0 %v2361
    %2433 = vmatmul.f32.gmra.mxu0 %v2370
    %v2434 = vpop.f32.mrf.mxu0
    %v2435 = vadd.f32 0.0, %v2434
    %2436 = vmatmul.f32.gmra.mxu0 %v2373
    %v2437 = vpop.f32.mrf.mxu0
    %v2438 = vadd.f32 0.0, %v2437
    %2439 = vmatmul.f32.gmra.mxu0 %v2376
    %v2440 = vpop.f32.mrf.mxu0
    %v2441 = vadd.f32 0.0, %v2440
    %2442 = vmatmul.f32.gmra.mxu0 %v2379
    %v2443 = vpop.f32.mrf.mxu0
    %v2444 = vadd.f32 0.0, %v2443
    %2445 = vmatmul.f32.gmra.mxu0 %v2382
    %v2446 = vpop.f32.mrf.mxu0
    %v2447 = vadd.f32 0.0, %v2446
    %2448 = vmatmul.f32.gmra.mxu0 %v2385
    %v2449 = vpop.f32.mrf.mxu0
    %v2450 = vadd.f32 0.0, %v2449
    %2451 = vmatmul.f32.gmra.mxu0 %v2388
    %v2452 = vpop.f32.mrf.mxu0
    %v2453 = vadd.f32 0.0, %v2452
    %2454 = vmatmul.f32.gmra.mxu0 %v2391
    %v2455 = vpop.f32.mrf.mxu0
    %v2456 = vadd.f32 0.0, %v2455
    %2457 = vmatmul.f32.gmra.mxu0 %v2394
    %v2458 = vpop.f32.mrf.mxu0
    %v2459 = vadd.f32 0.0, %v2458
    %2460 = vmatmul.f32.gmra.mxu0 %v2397
    %v2461 = vpop.f32.mrf.mxu0
    %v2462 = vadd.f32 0.0, %v2461
    %2463 = vmatmul.f32.gmra.mxu0 %v2400
    %v2464 = vpop.f32.mrf.mxu0
    %v2465 = vadd.f32 0.0, %v2464
    %2466 = vmatmul.f32.gmra.mxu0 %v2403
    %v2467 = vpop.f32.mrf.mxu0
    %v2468 = vadd.f32 0.0, %v2467
    %2469 = vmatmul.f32.gmra.mxu0 %v2406
    %v2470 = vpop.f32.mrf.mxu0
    %v2471 = vadd.f32 0.0, %v2470
    %2472 = vmatmul.f32.gmra.mxu0 %v2409
    %v2473 = vpop.f32.mrf.mxu0
    %v2474 = vadd.f32 0.0, %v2473
    %2475 = vmatmul.f32.gmra.mxu0 %v2412
    %v2476 = vpop.f32.mrf.mxu0
    %v2477 = vadd.f32 0.0, %v2476
    %2478 = vmatmul.f32.gmra.mxu0 %v2415
    %v2479 = vpop.f32.mrf.mxu0
    %v2480 = vadd.f32 0.0, %v2479
    %2481 = vdwg.mxu0
    %v2482 = vadd.f32 %v2327, %v2435
    %v2483 = vadd.f32 %v2328, %v2438
    %v2484 = vadd.f32 %v2329, %v2441
    %v2485 = vadd.f32 %v2330, %v2444
    %v2486 = vadd.f32 %v2331, %v2447
    %v2487 = vadd.f32 %v2332, %v2450
    %v2488 = vadd.f32 %v2333, %v2453
    %v2489 = vadd.f32 %v2334, %v2456
    %v2490 = vadd.f32 %v2335, %v2459
    %v2491 = vadd.f32 %v2336, %v2462
    %v2492 = vadd.f32 %v2337, %v2465
    %v2493 = vadd.f32 %v2338, %v2468
    %v2494 = vadd.f32 %v2339, %v2471
    %v2495 = vadd.f32 %v2340, %v2474
    %v2496 = vadd.f32 %v2341, %v2477
    %v2497 = vadd.f32 %v2342, %v2480
    %v2498 = vld [vmem:[%s2343 + $0x1] sm:$0xff]
    %v2499 = vld [vmem:[%s2343 + $0x11] sm:$0xff]
    %v2500 = vld [vmem:[%s2343 + $0x21] sm:$0xff]
    %v2501 = vld [vmem:[%s2343 + $0x31] sm:$0xff]
    %v2502 = vld [vmem:[%s2343 + $0x41] sm:$0xff]
    %v2503 = vld [vmem:[%s2343 + $0x51] sm:$0xff]
    %v2504 = vld [vmem:[%s2343 + $0x61] sm:$0xff]
    %v2505 = vld [vmem:[%s2343 + $0x71] sm:$0xff]
    %v2506 = vld [vmem:[%s2343 + $0xa1] sm:$0xff]
    %v2507 = vld [vmem:[%s2343 + $0xb1] sm:$0xff]
    %v2508 = vld [vmem:[%s2343 + $0xc1] sm:$0xff]
    %v2509 = vld [vmem:[%s2343 + $0xd1] sm:$0xff]
    %v2510 = vld [vmem:[%s2343 + $0xe1] sm:$0xff]
    %v2511 = vld [vmem:[%s2343 + $0xf1] sm:$0xff]
    %v2512 = vld [vmem:[%s2343 + $0x101] sm:$0xff]
    %v2513 = vld [vmem:[%s2343 + $0x111] sm:$0xff]
    %s2514 = scalar_lea.vmem [#allocation4], 448
    %v2515 = vld [vmem:[%s2514] sm:$0xff]
    %v2516 = vld [vmem:[%s2514 + $0x8] sm:$0xff]
    %v2517 = vld [vmem:[%s2514 + $0x10] sm:$0xff]
    %v2518 = vld [vmem:[%s2514 + $0x18] sm:$0xff]
    %v2519 = vld [vmem:[%s2514 + $0x20] sm:$0xff]
    %v2520 = vld [vmem:[%s2514 + $0x28] sm:$0xff]
    %v2521 = vld [vmem:[%s2514 + $0x30] sm:$0xff]
    %v2522 = vld [vmem:[%s2514 + $0x38] sm:$0xff]
    %v2524 = vsel %vm1393, %v2498, 0
    %v2527 = vsel %vm1393, %v2499, 0
    %v2530 = vsel %vm1393, %v2500, 0
    %v2533 = vsel %vm1393, %v2501, 0
    %v2536 = vsel %vm1393, %v2502, 0
    %v2539 = vsel %vm1393, %v2503, 0
    %v2542 = vsel %vm1393, %v2504, 0
    %v2545 = vsel %vm1393, %v2505, 0
    %v2548 = vsel %vm1393, %v2506, 0
    %v2551 = vsel %vm1393, %v2507, 0
    %v2554 = vsel %vm1393, %v2508, 0
    %v2557 = vsel %vm1393, %v2509, 0
    %v2560 = vsel %vm1393, %v2510, 0
    %v2563 = vsel %vm1393, %v2511, 0
    %v2566 = vsel %vm1393, %v2512, 0
    %v2569 = vsel %vm1393, %v2513, 0
    %2571 = vmatpush.msra.mxu0 0.0
    %2572 = vmatpush.msra.mxu0 0.0
    %2573 = vmatpush.msra.mxu0 0.0
    %2574 = vmatpush.msra.mxu0 0.0
    %2575 = vmatpush.msra.mxu0 0.0
    %2576 = vmatpush.msra.mxu0 0.0
    %2577 = vmatpush.msra.mxu0 0.0
    %2578 = vmatpush.msra.mxu0 0.0
    %2579 = vmatpush.msra.mxu0 %v2522
    %2580 = vmatpush.msra.mxu0 %v2521
    %2581 = vmatpush.msra.mxu0 %v2520
    %2582 = vmatpush.msra.mxu0 %v2519
    %2583 = vmatpush.msra.mxu0 %v2518
    %2584 = vmatpush.msra.mxu0 %v2517
    %2585 = vmatpush.msra.mxu0 %v2516
    %2586 = vmatpush.msra.mxu0 %v2515
    %2587 = vmatmul.f32.gmra.mxu0 %v2524
    %v2588 = vpop.f32.mrf.mxu0
    %v2589 = vadd.f32 0.0, %v2588
    %2590 = vmatmul.f32.gmra.mxu0 %v2527
    %v2591 = vpop.f32.mrf.mxu0
    %v2592 = vadd.f32 0.0, %v2591
    %2593 = vmatmul.f32.gmra.mxu0 %v2530
    %v2594 = vpop.f32.mrf.mxu0
    %v2595 = vadd.f32 0.0, %v2594
    %2596 = vmatmul.f32.gmra.mxu0 %v2533
    %v2597 = vpop.f32.mrf.mxu0
    %v2598 = vadd.f32 0.0, %v2597
    %2599 = vmatmul.f32.gmra.mxu0 %v2536
    %v2600 = vpop.f32.mrf.mxu0
    %v2601 = vadd.f32 0.0, %v2600
    %2602 = vmatmul.f32.gmra.mxu0 %v2539
    %v2603 = vpop.f32.mrf.mxu0
    %v2604 = vadd.f32 0.0, %v2603
    %2605 = vmatmul.f32.gmra.mxu0 %v2542
    %v2606 = vpop.f32.mrf.mxu0
    %v2607 = vadd.f32 0.0, %v2606
    %2608 = vmatmul.f32.gmra.mxu0 %v2545
    %v2609 = vpop.f32.mrf.mxu0
    %v2610 = vadd.f32 0.0, %v2609
    %2611 = vmatmul.f32.gmra.mxu0 %v2548
    %v2612 = vpop.f32.mrf.mxu0
    %v2613 = vadd.f32 0.0, %v2612
    %2614 = vmatmul.f32.gmra.mxu0 %v2551
    %v2615 = vpop.f32.mrf.mxu0
    %v2616 = vadd.f32 0.0, %v2615
    %2617 = vmatmul.f32.gmra.mxu0 %v2554
    %v2618 = vpop.f32.mrf.mxu0
    %v2619 = vadd.f32 0.0, %v2618
    %2620 = vmatmul.f32.gmra.mxu0 %v2557
    %v2621 = vpop.f32.mrf.mxu0
    %v2622 = vadd.f32 0.0, %v2621
    %2623 = vmatmul.f32.gmra.mxu0 %v2560
    %v2624 = vpop.f32.mrf.mxu0
    %v2625 = vadd.f32 0.0, %v2624
    %2626 = vmatmul.f32.gmra.mxu0 %v2563
    %v2627 = vpop.f32.mrf.mxu0
    %v2628 = vadd.f32 0.0, %v2627
    %2629 = vmatmul.f32.gmra.mxu0 %v2566
    %v2630 = vpop.f32.mrf.mxu0
    %v2631 = vadd.f32 0.0, %v2630
    %2632 = vmatmul.f32.gmra.mxu0 %v2569
    %v2633 = vpop.f32.mrf.mxu0
    %v2634 = vadd.f32 0.0, %v2633
    %2635 = vdwg.mxu0
    %v2636 = vadd.f32 %v2482, %v2589
    %v2637 = vadd.f32 %v2483, %v2592
    %v2638 = vadd.f32 %v2484, %v2595
    %v2639 = vadd.f32 %v2485, %v2598
    %v2640 = vadd.f32 %v2486, %v2601
    %v2641 = vadd.f32 %v2487, %v2604
    %v2642 = vadd.f32 %v2488, %v2607
    %v2643 = vadd.f32 %v2489, %v2610
    %v2644 = vadd.f32 %v2490, %v2613
    %v2645 = vadd.f32 %v2491, %v2616
    %v2646 = vadd.f32 %v2492, %v2619
    %v2647 = vadd.f32 %v2493, %v2622
    %v2648 = vadd.f32 %v2494, %v2625
    %v2649 = vadd.f32 %v2495, %v2628
    %v2650 = vadd.f32 %v2496, %v2631
    %v2651 = vadd.f32 %v2497, %v2634
    %v2652 = vld [vmem:[%s2343 + $0x2] sm:$0xff]
    %v2653 = vld [vmem:[%s2343 + $0x12] sm:$0xff]
    %v2654 = vld [vmem:[%s2343 + $0x22] sm:$0xff]
    %v2655 = vld [vmem:[%s2343 + $0x32] sm:$0xff]
    %v2656 = vld [vmem:[%s2343 + $0x42] sm:$0xff]
    %v2657 = vld [vmem:[%s2343 + $0x52] sm:$0xff]
    %v2658 = vld [vmem:[%s2343 + $0x62] sm:$0xff]
    %v2659 = vld [vmem:[%s2343 + $0x72] sm:$0xff]
    %v2660 = vld [vmem:[%s2343 + $0xa2] sm:$0xff]
    %v2661 = vld [vmem:[%s2343 + $0xb2] sm:$0xff]
    %v2662 = vld [vmem:[%s2343 + $0xc2] sm:$0xff]
    %v2663 = vld [vmem:[%s2343 + $0xd2] sm:$0xff]
    %v2664 = vld [vmem:[%s2343 + $0xe2] sm:$0xff]
    %v2665 = vld [vmem:[%s2343 + $0xf2] sm:$0xff]
    %v2666 = vld [vmem:[%s2343 + $0x102] sm:$0xff]
    %v2667 = vld [vmem:[%s2343 + $0x112] sm:$0xff]
    %s2668 = scalar_lea.vmem [#allocation4], 512
    %v2669 = vld [vmem:[%s2668] sm:$0xff]
    %v2670 = vld [vmem:[%s2668 + $0x8] sm:$0xff]
    %v2671 = vld [vmem:[%s2668 + $0x10] sm:$0xff]
    %v2672 = vld [vmem:[%s2668 + $0x18] sm:$0xff]
    %v2673 = vld [vmem:[%s2668 + $0x20] sm:$0xff]
    %v2674 = vld [vmem:[%s2668 + $0x28] sm:$0xff]
    %v2675 = vld [vmem:[%s2668 + $0x30] sm:$0xff]
    %v2676 = vld [vmem:[%s2668 + $0x38] sm:$0xff]
    %v2678 = vsel %vm1393, %v2652, 0
    %v2681 = vsel %vm1393, %v2653, 0
    %v2684 = vsel %vm1393, %v2654, 0
    %v2687 = vsel %vm1393, %v2655, 0
    %v2690 = vsel %vm1393, %v2656, 0
    %v2693 = vsel %vm1393, %v2657, 0
    %v2696 = vsel %vm1393, %v2658, 0
    %v2699 = vsel %vm1393, %v2659, 0
    %v2702 = vsel %vm1393, %v2660, 0
    %v2705 = vsel %vm1393, %v2661, 0
    %v2708 = vsel %vm1393, %v2662, 0
    %v2711 = vsel %vm1393, %v2663, 0
    %v2714 = vsel %vm1393, %v2664, 0
    %v2717 = vsel %vm1393, %v2665, 0
    %v2720 = vsel %vm1393, %v2666, 0
    %v2723 = vsel %vm1393, %v2667, 0
    %2725 = vmatpush.msra.mxu0 0.0
    %2726 = vmatpush.msra.mxu0 0.0
    %2727 = vmatpush.msra.mxu0 0.0
    %2728 = vmatpush.msra.mxu0 0.0
    %2729 = vmatpush.msra.mxu0 0.0
    %2730 = vmatpush.msra.mxu0 0.0
    %2731 = vmatpush.msra.mxu0 0.0
    %2732 = vmatpush.msra.mxu0 0.0
    %2733 = vmatpush.msra.mxu0 %v2676
    %2734 = vmatpush.msra.mxu0 %v2675
    %2735 = vmatpush.msra.mxu0 %v2674
    %2736 = vmatpush.msra.mxu0 %v2673
    %2737 = vmatpush.msra.mxu0 %v2672
    %2738 = vmatpush.msra.mxu0 %v2671
    %2739 = vmatpush.msra.mxu0 %v2670
    %2740 = vmatpush.msra.mxu0 %v2669
    %2741 = vmatmul.f32.gmra.mxu0 %v2678
    %v2742 = vpop.f32.mrf.mxu0
    %v2743 = vadd.f32 0.0, %v2742
    %2744 = vmatmul.f32.gmra.mxu0 %v2681
    %v2745 = vpop.f32.mrf.mxu0
    %v2746 = vadd.f32 0.0, %v2745
    %2747 = vmatmul.f32.gmra.mxu0 %v2684
    %v2748 = vpop.f32.mrf.mxu0
    %v2749 = vadd.f32 0.0, %v2748
    %2750 = vmatmul.f32.gmra.mxu0 %v2687
    %v2751 = vpop.f32.mrf.mxu0
    %v2752 = vadd.f32 0.0, %v2751
    %2753 = vmatmul.f32.gmra.mxu0 %v2690
    %v2754 = vpop.f32.mrf.mxu0
    %v2755 = vadd.f32 0.0, %v2754
    %2756 = vmatmul.f32.gmra.mxu0 %v2693
    %v2757 = vpop.f32.mrf.mxu0
    %v2758 = vadd.f32 0.0, %v2757
    %2759 = vmatmul.f32.gmra.mxu0 %v2696
    %v2760 = vpop.f32.mrf.mxu0
    %v2761 = vadd.f32 0.0, %v2760
    %2762 = vmatmul.f32.gmra.mxu0 %v2699
    %v2763 = vpop.f32.mrf.mxu0
    %v2764 = vadd.f32 0.0, %v2763
    %2765 = vmatmul.f32.gmra.mxu0 %v2702
    %v2766 = vpop.f32.mrf.mxu0
    %v2767 = vadd.f32 0.0, %v2766
    %2768 = vmatmul.f32.gmra.mxu0 %v2705
    %v2769 = vpop.f32.mrf.mxu0
    %v2770 = vadd.f32 0.0, %v2769
    %2771 = vmatmul.f32.gmra.mxu0 %v2708
    %v2772 = vpop.f32.mrf.mxu0
    %v2773 = vadd.f32 0.0, %v2772
    %2774 = vmatmul.f32.gmra.mxu0 %v2711
    %v2775 = vpop.f32.mrf.mxu0
    %v2776 = vadd.f32 0.0, %v2775
    %2777 = vmatmul.f32.gmra.mxu0 %v2714
    %v2778 = vpop.f32.mrf.mxu0
    %v2779 = vadd.f32 0.0, %v2778
    %2780 = vmatmul.f32.gmra.mxu0 %v2717
    %v2781 = vpop.f32.mrf.mxu0
    %v2782 = vadd.f32 0.0, %v2781
    %2783 = vmatmul.f32.gmra.mxu0 %v2720
    %v2784 = vpop.f32.mrf.mxu0
    %v2785 = vadd.f32 0.0, %v2784
    %2786 = vmatmul.f32.gmra.mxu0 %v2723
    %v2787 = vpop.f32.mrf.mxu0
    %v2788 = vadd.f32 0.0, %v2787
    %2789 = vdwg.mxu0
    %v2790 = vadd.f32 %v2636, %v2743
    %v2791 = vadd.f32 %v2637, %v2746
    %v2792 = vadd.f32 %v2638, %v2749
    %v2793 = vadd.f32 %v2639, %v2752
    %v2794 = vadd.f32 %v2640, %v2755
    %v2795 = vadd.f32 %v2641, %v2758
    %v2796 = vadd.f32 %v2642, %v2761
    %v2797 = vadd.f32 %v2643, %v2764
    %v2798 = vadd.f32 %v2644, %v2767
    %v2799 = vadd.f32 %v2645, %v2770
    %v2800 = vadd.f32 %v2646, %v2773
    %v2801 = vadd.f32 %v2647, %v2776
    %v2802 = vadd.f32 %v2648, %v2779
    %v2803 = vadd.f32 %v2649, %v2782
    %v2804 = vadd.f32 %v2650, %v2785
    %v2805 = vadd.f32 %v2651, %v2788
    %v2806 = vld [vmem:[%s4] sm:$0x1]
    %v2808 = vperm.slane %v2806, 0
    %v2810 = vadd.f32 %v2790, %v2808
    %v2811 = vadd.f32 %v2791, %v2808
    %v2812 = vadd.f32 %v2792, %v2808
    %v2813 = vadd.f32 %v2793, %v2808
    %v2814 = vadd.f32 %v2794, %v2808
    %v2815 = vadd.f32 %v2795, %v2808
    %v2816 = vadd.f32 %v2796, %v2808
    %v2817 = vadd.f32 %v2797, %v2808
    %v2818 = vadd.f32 %v2798, %v2808
    %v2819 = vadd.f32 %v2799, %v2808
    %v2820 = vadd.f32 %v2800, %v2808
    %v2821 = vadd.f32 %v2801, %v2808
    %v2822 = vadd.f32 %v2802, %v2808
    %v2823 = vadd.f32 %v2803, %v2808
    %v2824 = vadd.f32 %v2804, %v2808
    %v2825 = vadd.f32 %v2805, %v2808
    %v2826 = vmax.f32 %v2810, 0.0
    %v2827 = vmax.f32 %v2811, 0.0
    %v2828 = vmax.f32 %v2812, 0.0
    %v2829 = vmax.f32 %v2813, 0.0
    %v2830 = vmax.f32 %v2814, 0.0
    %v2831 = vmax.f32 %v2815, 0.0
    %v2832 = vmax.f32 %v2816, 0.0
    %v2833 = vmax.f32 %v2817, 0.0
    %v2834 = vmax.f32 %v2818, 0.0
    %v2835 = vmax.f32 %v2819, 0.0
    %v2836 = vmax.f32 %v2820, 0.0
    %v2837 = vmax.f32 %v2821, 0.0
    %v2838 = vmax.f32 %v2822, 0.0
    %v2839 = vmax.f32 %v2823, 0.0
    %v2840 = vmax.f32 %v2824, 0.0
    %v2841 = vmax.f32 %v2825, 0.0
    %v2842 = vmax.f32 %v2826, %v2827
    %v2843 = vmax.f32 %v2828, %v2829
    %v2844 = vmax.f32 %v2830, %v2831
    %v2845 = vmax.f32 %v2832, %v2833
    %v2846 = vmax.f32 %v2834, %v2835
    %v2847 = vmax.f32 %v2836, %v2837
    %v2848 = vmax.f32 %v2838, %v2839
    %v2849 = vmax.f32 %v2840, %v2841
    %2858 = vrot.lane.b32.xlu0 %v2842, 96
    %v2859 = vpop.permute.xlu0 %2858
    %2860 = vrot.lane.b32.xlu0 %v2843, 96
    %v2861 = vpop.permute.xlu0 %2860
    %2862 = vrot.lane.b32.xlu0 %v2844, 96
    %v2863 = vpop.permute.xlu0 %2862
    %2864 = vrot.lane.b32.xlu0 %v2845, 96
    %v2865 = vpop.permute.xlu0 %2864
    %2866 = vrot.lane.b32.xlu0 %v2846, 96
    %v2867 = vpop.permute.xlu0 %2866
    %2868 = vrot.lane.b32.xlu0 %v2847, 96
    %v2869 = vpop.permute.xlu0 %2868
    %2870 = vrot.lane.b32.xlu0 %v2848, 96
    %v2871 = vpop.permute.xlu0 %2870
    %2872 = vrot.lane.b32.xlu0 %v2849, 96
    %v2873 = vpop.permute.xlu0 %2872
    %v2882 = vmax.f32 %v2842, %v2859
    %v2883 = vmax.f32 %v2843, %v2861
    %v2884 = vmax.f32 %v2844, %v2863
    %v2885 = vmax.f32 %v2845, %v2865
    %v2886 = vmax.f32 %v2846, %v2867
    %v2887 = vmax.f32 %v2847, %v2869
    %v2888 = vmax.f32 %v2848, %v2871
    %v2889 = vmax.f32 %v2849, %v2873
    %2890 = vst.msk [vmem:[#allocation3] sm:$0xff] %vm78, %v2882
    %2891 = vst.msk [vmem:[#allocation3 + $0x8] sm:$0xff] %vm78, %v2883
    %2892 = vst.msk [vmem:[#allocation3 + $0x10] sm:$0xff] %vm78, %v2884
    %2893 = vst.msk [vmem:[#allocation3 + $0x18] sm:$0xff] %vm78, %v2885
    %2894 = vst.msk [vmem:[#allocation3 + $0x20] sm:$0xff] %vm78, %v2886
    %2895 = vst.msk [vmem:[#allocation3 + $0x28] sm:$0xff] %vm78, %v2887
    %2896 = vst.msk [vmem:[#allocation3 + $0x30] sm:$0xff] %vm78, %v2888
    %2897 = vst.msk [vmem:[#allocation3 + $0x38] sm:$0xff] %vm78, %v2889
    %v2898 = vld [vmem:[#allocation3] ss:$2 sm:$0xff]
    %s2899 = scalar_lea.vmem [#allocation3], 16
    %v2900 = vld [vmem:[%s2899] ss:$2 sm:$0xff]
    %s2901 = scalar_lea.vmem [#allocation3], 32
    %v2902 = vld [vmem:[%s2901] ss:$2 sm:$0xff]
    %s2903 = scalar_lea.vmem [#allocation3], 48
    %v2904 = vld [vmem:[%s2903] ss:$2 sm:$0xff]
    %s2905 = scalar_lea.vmem [#allocation3], 1
    %v2906 = vld [vmem:[%s2905] ss:$2 sm:$0xff]
    %s2907 = scalar_lea.vmem [#allocation3], 17
    %v2908 = vld [vmem:[%s2907] ss:$2 sm:$0xff]
    %s2909 = scalar_lea.vmem [#allocation3], 33
    %v2910 = vld [vmem:[%s2909] ss:$2 sm:$0xff]
    %s2911 = scalar_lea.vmem [#allocation3], 49
    %v2912 = vld [vmem:[%s2911] ss:$2 sm:$0xff]
    %v2913 = vmax.f32 %v2898, %v2906
    %v2914 = vmax.f32 %v2900, %v2908
    %v2915 = vmax.f32 %v2902, %v2910
    %v2916 = vmax.f32 %v2904, %v2912
    %2917 = vst.msk [vmem:[#allocation7] sm:$0xff] %vm78, %v2913
    %2918 = vst.msk [vmem:[#allocation7 + $0x8] sm:$0xff] %vm78, %v2914
    %2919 = vst.msk [vmem:[#allocation7 + $0x10] sm:$0xff] %vm78, %v2915
    %2920 = vst.msk [vmem:[#allocation7 + $0x18] sm:$0xff] %vm78, %v2916
    // Predicated region
    $region26: #{tpu_custom_call.1} parent=1 // pred_check
      _
    $region27: #{tpu_custom_call.1} parent=1 // pred_check_branch
      %2922 = sbr.rel (0) target = $region29
    $region28: #{tpu_custom_call.1} parent=1 // pred_region
      %2924 = vsyncadd [#allocation6], 0
      %s2925 = sshll.u32 [#allocation7], 4
      %s2926 = int_to_ptr.vmem [resolvable:$true] %s2925
      %s2927 = sshll.u32 %s5, 4
      %s2928 = int_to_ptr.hbm [resolvable:$true] %s2927
      %2933 = dma.vmem_to_hbm [thread:$0]  %s2926, 512, %s2928, [#allocation6], 128, 128, 8
    $region29: #{tpu_custom_call.1} parent=1 // pred_fallthru
      _
    // Predicated region
    $region30: #{tpu_custom_call.1} parent=1 // pred_check
      _
    $region31: #{tpu_custom_call.1} parent=1 // pred_check_branch
      %2935 = sbr.rel (0) target = $region33
    $region32: #{tpu_custom_call.1} parent=1 // pred_region
      %2937 = dma.done [#allocation6], 512
    $region33: #{tpu_custom_call.1} parent=1 // pred_fallthru
      _
    %2938 = vsyncpa [#allocation5], 1
    %2939 = vsyncpa [#allocation6], 1

</llo_original>
